<compile_context>
chip_gen: v6e
topology: v6e:2x2x1
jax: 0.10.0
libtpu: 0.0.40
codegen_flags: <defaults>
</compile_context>

<pallas_src>
import math

import jax
import jax.numpy as jnp
from jax.experimental import pallas as pl
from jax.experimental.pallas import tpu as pltpu


NEG_INF = -1e30  # finite mask sentinel: fully-masked rows -> uniform softmax, not NaN


def make_msa_kernel(num_heads: int, head_dim: int, block_b: int, len_q: int, len_k: int,
                    exp_in_bf16: bool):
    H, dh, BB, Lq, Lk = num_heads, head_dim, block_b, len_q, len_k
    M, N = BB * Lq, BB * Lk

    def msa_kernel(vl_ref,                      # scalar prefetch (SMEM), shape (B,)
                   q_ref, k_ref, v_ref,         # (BB*Lq, Dq), (BB*Lk, Dk), (BB*Lk, Dv)  source dtype
                   wq_ref, wk_ref, wv_ref,      # (Dq, H*dh), ... compute dtype; wq pre-scaled by 1/sqrt(dh)
                   wo_ref,                      # (H*dh, Npad)  zero-padded columns, compute dtype
                   o_ref):                      # (BB*Lq, Npad) lane-dense output
        i0 = pl.program_id(0)
        cdt = wq_ref.dtype                      # compute dtype for MXU inputs (f32/bf16)

        # Fused projections: one big matmul each, f32 accumulation on the MXU.
        # Activations are cast here (after load), not in the wrapper.
        Q = jnp.dot(q_ref[...].astype(cdt), wq_ref[...], preferred_element_type=jnp.float32)
        K = jnp.dot(k_ref[...].astype(cdt), wk_ref[...], preferred_element_type=jnp.float32)
        V = jnp.dot(v_ref[...].astype(cdt), wv_ref[...], preferred_element_type=jnp.float32)
        Qc, Kc, Vc = Q.astype(cdt), K.astype(cdt), V.astype(cdt)

        # --- Vectorized block-diagonal + valid-length mask -------------------------
        col = jax.lax.broadcasted_iota(jnp.int32, (M, N), 1)
        if BB == 1:
            mask = col < vl_ref[i0]                                   # (M, N) bool
        else:
            # Per-column valid length: BB tiny (1, N) selects (single-vreg work),
            # then ~5 full-(M, N) ops.  Lq/Lk are compile-time constants.
            col1 = jax.lax.broadcasted_iota(jnp.int32, (1, N), 1)
            blk1 = col1 // Lk
            vl_row = jnp.zeros((1, N), jnp.int32)
            for b in range(BB):
                vl_row = jnp.where(blk1 == b, vl_ref[i0 * BB + b], vl_row)
            row = jax.lax.broadcasted_iota(jnp.int32, (M, N), 0)
            col_blk = col // Lk
            col_in = col - col_blk * Lk                               # col % Lk
            mask = ((row // Lq) == col_blk) & (col_in < vl_row)       # (M, N) bool

        heads = []
        for h in range(H):
            sl = slice(h * dh, (h + 1) * dh)
            Qh, Kh, Vh = Qc[:, sl], Kc[:, sl], Vc[:, sl]

            # Q @ K^T without materializing a transpose: contract the last dims.
            # 1/sqrt(dh) is already folded into W_q.
            s = jax.lax.dot_general(
                Qh, Kh, (((1,), (1,)), ((), ())),
                preferred_element_type=jnp.float32)                   # (M, N) f32
            s = jnp.where(mask, s, NEG_INF)

            m = jnp.max(s, axis=-1, keepdims=True)
            if exp_in_bf16:
                # bf16 EUP/VPU path (v6e/v7x): exp + normalize in bf16, denom/Newton in f32.
                p = jnp.exp((s - m).astype(jnp.bfloat16))             # masked -> 0
                denom = jnp.sum(p.astype(jnp.float32), axis=-1, keepdims=True)
            else:
                p = jnp.exp(s - m)                                    # masked -> 0
                denom = jnp.sum(p, axis=-1, keepdims=True)
            r = pl.reciprocal(denom, approx=True)                     # EUP slot
            r = r * (2.0 - denom * r)                                 # 1 Newton step
            p = p * r.astype(p.dtype)

            # Cross-batch entries of p are exactly 0, so this is the correct per-batch P@V.
            heads.append(jnp.dot(p.astype(cdt), Vh,
                                 preferred_element_type=jnp.float32))  # (M, dh)

        o_cat = jnp.concatenate(heads, axis=-1)                       # (M, H*dh)
        o_ref[...] = jnp.dot(o_cat.astype(cdt), wo_ref[...],
                             preferred_element_type=jnp.float32
                             ).astype(o_ref.dtype)                    # (M, Npad)

    return msa_kernel


def _bf16_elementwise_ok():
    """bf16 VPU/EUP exists on v6e/v7x; not on v5e and earlier generations."""
    try:
        kind = jax.devices()[0].device_kind.lower()
    except Exception:
        return False
    return not any(old in kind for old in ("v2", "v3", "v4", "v5"))


def msa_pallas(queries, keys, values, valid_lens, wq, wk, wv, wo, num_heads,
               *, block_b=None, compute_dtype=jnp.float32, bf16_softmax=None):
    out_dtype = queries.dtype
    B, Lq, Dq = queries.shape
    _, Lk, Dk = keys.shape
    _, _, Dv = values.shape
    NH = wq.shape[1]
    dh = NH // num_heads

    # ---- batch-block (BB) selection ------------------------------------------------
    # Block-diagonal batching only pays when Lk << 128 (it wastes (BB-1)/BB of the
    # QK^T / exp / P@V work), so gate on Lk; keep BB*Lk ~ 128; and cap BB at B//2 so
    # the grid has >= 2 steps (lets ("parallel",) shard over the two TCs on v7x).
    if block_b is None:
        block_b = 1 if Lk >= 128 else max(1, 128 // Lk)
        block_b = min(block_b, B)
        if B >= 2:
            block_b = min(block_b, B // 2)
    BB = max(1, min(int(block_b), B))
    # Must divide B; block sublane dims must be multiples of 8 unless the block spans B.
    while BB > 1 and not (B % BB == 0 and
                          (BB == B or ((BB * Lq) % 8 == 0 and (BB * Lk) % 8 == 0))):
        BB -= 1

    # Lane-dense output: pad W_o's output dim to a multiple of 128 with zeros.
    # NOTE: for small NH this writes extra HBM bytes; at toy sizes it is negligible,
    # but it should be re-measured (xprof, min of 3) before keeping at other shapes.
    Npad = ((NH + 127) // 128) * 128

    cdt = jnp.dtype(compute_dtype)
    if bf16_softmax is None:
        bf16_softmax = (cdt == jnp.bfloat16) and _bf16_elementwise_ok()
    exp_in_bf16 = bool(bf16_softmax) and (cdt == jnp.bfloat16)

    # Weights are tiny: cast (and fold the softmax scale into W_q) in the wrapper.
    scale = 1.0 / math.sqrt(dh)
    wq_c = (wq * scale).astype(cdt)
    wk_c = wk.astype(cdt)
    wv_c = wv.astype(cdt)
    wo_p = wo if Npad == NH else jnp.pad(wo, ((0, 0), (0, Npad - NH)))
    wo_c = wo_p.astype(cdt)

    # Activations keep their source dtype (cast happens inside the kernel, after load).
    q2 = queries.reshape(B * Lq, Dq)
    k2 = keys.reshape(B * Lk, Dk)
    v2 = values.reshape(B * Lk, Dv)

    kernel = make_msa_kernel(num_heads, dh, BB, Lq, Lk, exp_in_bf16)

    grid_spec = pltpu.PrefetchScalarGridSpec(
        num_scalar_prefetch=1,
        grid=(B // BB,),
        in_specs=[
            pl.BlockSpec((BB * Lq, Dq), lambda i, vl: (i, 0)),
            pl.BlockSpec((BB * Lk, Dk), lambda i, vl: (i, 0)),
            pl.BlockSpec((BB * Lk, Dv), lambda i, vl: (i, 0)),
            pl.BlockSpec((Dq, NH), lambda i, vl: (0, 0)),
            pl.BlockSpec((Dk, NH), lambda i, vl: (0, 0)),
            pl.BlockSpec((Dv, NH), lambda i, vl: (0, 0)),
            pl.BlockSpec((NH, Npad), lambda i, vl: (0, 0)),
        ],
        out_specs=pl.BlockSpec((BB * Lq, Npad), lambda i, vl: (i, 0)),
    )

    out = pl.pallas_call(
        kernel,
        out_shape=jax.ShapeDtypeStruct((B * Lq, Npad), out_dtype),
        grid_spec=grid_spec,
        compiler_params=pltpu.CompilerParams(
            dimension_semantics=("parallel",)),   # batch axis parallel (v7x: 2 TCs)
    )(valid_lens.astype(jnp.int32), q2, k2, v2, wq_c, wk_c, wv_c, wo_c)

    return out[:, :NH].reshape(B, Lq, NH)


def msa_reference(queries, keys, values, valid_lens, wq, wk, wv, wo, num_heads):
    """Pure-JAX replica of the PyTorch MSA.forward (eval mode)."""
    B, Lq, _ = queries.shape
    Lk = keys.shape[1]
    H = num_heads
    Q = queries @ wq
    K = keys @ wk
    V = values @ wv
    dh = Q.shape[-1] // H
    Qh = Q.reshape(B, Lq, H, dh).transpose(0, 2, 1, 3)
    Kh = K.reshape(B, Lk, H, dh).transpose(0, 2, 1, 3)
    Vh = V.reshape(B, Lk, H, dh).transpose(0, 2, 1, 3)
    s = jnp.einsum('bhqd,bhkd->bhqk', Qh, Kh) / math.sqrt(dh)
    mask = jnp.arange(Lk)[None, None, None, :] < valid_lens[:, None, None, None]
    s = jnp.where(mask, s, -jnp.inf)
    p = jax.nn.softmax(s, axis=-1)
    o = jnp.einsum('bhqk,bhkd->bhqd', p, Vh)
    o = o.transpose(0, 2, 1, 3).reshape(B, Lq, H * dh)
    return o @ wo


if __name__ == "__main__":
    # Small shapes consistent with MSA(key_size, query_size, value_size, num_hiddens, num_heads)
    B, Lq, Lk = 2, 8, 8
    query_size = key_size = value_size = 32
    num_hiddens, num_heads = 32, 4

    key = jax.random.PRNGKey(0)
    kq, kk, kv, kwq, kwk, kwv, kwo = jax.random.split(key, 7)

    queries = jax.random.normal(kq, (B, Lq, query_size), jnp.float32)
    keys_in = jax.random.normal(kk, (B, Lk, key_size), jnp.float32)
    values = jax.random.normal(kv, (B, Lk, value_size), jnp.float32)
    valid_lens = jnp.array([3, 6], dtype=jnp.int32)

    # Deterministic parameter init (Linear weights stored as (in, out); bias=False).
    scale_w = 0.1
    wq = scale_w * jax.random.normal(kwq, (query_size, num_hiddens), jnp.float32)
    wk = scale_w * jax.random.normal(kwk, (key_size, num_hiddens), jnp.float32)
    wv = scale_w * jax.random.normal(kwv, (value_size, num_hiddens), jnp.float32)
    wo = scale_w * jax.random.normal(kwo, (num_hiddens, num_hiddens), jnp.float32)

    ref = msa_reference(queries, keys_in, values, valid_lens, wq, wk, wv, wo, num_heads)

    # 1) f32 path, auto BB (BB=1 here -> grid=2, per-batch mask fast path).
    out = msa_pallas(queries, keys_in, values, valid_lens, wq, wk, wv, wo, num_heads)
    out = jax.block_until_ready(out)
    assert out.shape == (B, Lq, num_hiddens)
    assert jnp.allclose(out, ref, atol=2e-4, rtol=2e-4), "f32 kernel mismatch vs JAX reference"

    # 2) f32 path with explicit BB=2: exercises the block-diagonal batched mask/matmuls.
    out_bb = msa_pallas(queries, keys_in, values, valid_lens, wq, wk, wv, wo, num_heads,
                        block_b=2)
    out_bb = jax.block_until_ready(out_bb)
    assert jnp.allclose(out_bb, ref, atol=2e-4, rtol=2e-4), "BB=2 kernel mismatch vs JAX reference"

    # 3) bf16 MXU-input path (bf16 exp auto-enabled on v6e/v7x only); f32 accumulation.
    out_bf16 = msa_pallas(queries, keys_in, values, valid_lens, wq, wk, wv, wo,
                          num_heads, compute_dtype=jnp.bfloat16)
    out_bf16 = jax.block_until_ready(out_bf16)
    assert jnp.allclose(out_bf16, ref, atol=6e-2, rtol=6e-2), "bf16 kernel mismatch vs JAX reference"

    print("KERNEL_OK")
</pallas_src>

<mosaic_0001>
module attributes {stable_mosaic.version = 11 : i64} {
  func.func @msa_kernel(%arg0: i32, %arg1: memref<2xi32, #tpu.memory_space<smem>>, %arg2: memref<8x32xf32, #tpu.memory_space<vmem>>, %arg3: memref<8x32xf32, #tpu.memory_space<vmem>>, %arg4: memref<8x32xf32, #tpu.memory_space<vmem>>, %arg5: memref<32x32xf32, #tpu.memory_space<vmem>>, %arg6: memref<32x32xf32, #tpu.memory_space<vmem>>, %arg7: memref<32x32xf32, #tpu.memory_space<vmem>>, %arg8: memref<32x128xf32, #tpu.memory_space<vmem>>, %arg9: memref<8x128xf32, #tpu.memory_space<vmem>>) attributes {dimension_semantics = [#tpu.dimension_semantics<parallel>], iteration_bounds = array<i64: 2>, scalar_prefetch = 1 : i64, scratch_operands = 0 : i64, tpu.core_type = #tpu.core_type<tc>, window_params = [{transform_indices = @transform_0, window_bounds = array<i64: 8, 32>}, {transform_indices = @transform_1, window_bounds = array<i64: 8, 32>}, {transform_indices = @transform_2, window_bounds = array<i64: 8, 32>}, {pipeline_mode = #tpu.pipeline_mode<synchronous>, transform_indices = @transform_3, window_bounds = array<i64: 32, 32>}, {pipeline_mode = #tpu.pipeline_mode<synchronous>, transform_indices = @transform_4, window_bounds = array<i64: 32, 32>}, {pipeline_mode = #tpu.pipeline_mode<synchronous>, transform_indices = @transform_5, window_bounds = array<i64: 32, 32>}, {pipeline_mode = #tpu.pipeline_mode<synchronous>, transform_indices = @transform_6, window_bounds = array<i64: 32, 128>}, {transform_indices = @transform_7, window_bounds = array<i64: 8, 128>}]} {
    %c0 = arith.constant 0 : index
    %c0_0 = arith.constant 0 : index
    %0 = vector.load %arg2[%c0, %c0_0] : memref<8x32xf32, #tpu.memory_space<vmem>>, vector<8x32xf32>
    %c0_1 = arith.constant 0 : index
    %c0_2 = arith.constant 0 : index
    %1 = vector.load %arg5[%c0_1, %c0_2] : memref<32x32xf32, #tpu.memory_space<vmem>>, vector<32x32xf32>
    %cst = arith.constant dense<0.000000e+00> : vector<8x32xf32>
    %2 = tpu.matmul %0, %1, %cst {dimension_numbers = #tpu.dot_dimension_numbers<[1], [0], [0], [1], [0, 0, 1, 1], [], []>} : vector<8x32xf32>, vector<32x32xf32>, vector<8x32xf32> -> vector<8x32xf32>
    %c0_3 = arith.constant 0 : index
    %c0_4 = arith.constant 0 : index
    %3 = vector.load %arg3[%c0_3, %c0_4] : memref<8x32xf32, #tpu.memory_space<vmem>>, vector<8x32xf32>
    %c0_5 = arith.constant 0 : index
    %c0_6 = arith.constant 0 : index
    %4 = vector.load %arg6[%c0_5, %c0_6] : memref<32x32xf32, #tpu.memory_space<vmem>>, vector<32x32xf32>
    %cst_7 = arith.constant dense<0.000000e+00> : vector<8x32xf32>
    %5 = tpu.matmul %3, %4, %cst_7 {dimension_numbers = #tpu.dot_dimension_numbers<[1], [0], [0], [1], [0, 0, 1, 1], [], []>} : vector<8x32xf32>, vector<32x32xf32>, vector<8x32xf32> -> vector<8x32xf32>
    %c0_8 = arith.constant 0 : index
    %c0_9 = arith.constant 0 : index
    %6 = vector.load %arg4[%c0_8, %c0_9] : memref<8x32xf32, #tpu.memory_space<vmem>>, vector<8x32xf32>
    %c0_10 = arith.constant 0 : index
    %c0_11 = arith.constant 0 : index
    %7 = vector.load %arg7[%c0_10, %c0_11] : memref<32x32xf32, #tpu.memory_space<vmem>>, vector<32x32xf32>
    %cst_12 = arith.constant dense<0.000000e+00> : vector<8x32xf32>
    %8 = tpu.matmul %6, %7, %cst_12 {dimension_numbers = #tpu.dot_dimension_numbers<[1], [0], [0], [1], [0, 0, 1, 1], [], []>} : vector<8x32xf32>, vector<32x32xf32>, vector<8x32xf32> -> vector<8x32xf32>
    %9 = tpu.iota {dimensions = array<i32: 1>} : vector<8x8xi32>
    %10 = arith.index_cast %arg0 : i32 to index
    %11 = memref.load %arg1[%10] : memref<2xi32, #tpu.memory_space<smem>>
    %12 = vector.broadcast %11 : i32 to vector<8x8xi32>
    %13 = arith.cmpi slt, %9, %12 : vector<8x8xi32>
    %14 = vector.extract_strided_slice %2 {offsets = [0, 0], sizes = [8, 8], strides = [1, 1]} : vector<8x32xf32> to vector<8x8xf32>
    %15 = vector.extract_strided_slice %5 {offsets = [0, 0], sizes = [8, 8], strides = [1, 1]} : vector<8x32xf32> to vector<8x8xf32>
    %16 = vector.extract_strided_slice %8 {offsets = [0, 0], sizes = [8, 8], strides = [1, 1]} : vector<8x32xf32> to vector<8x8xf32>
    %cst_13 = arith.constant dense<0.000000e+00> : vector<8x8xf32>
    %17 = tpu.matmul %14, %15, %cst_13 {dimension_numbers = #tpu.dot_dimension_numbers<[1], [1], [0], [0], [0, 0, 1, 0], [], []>} : vector<8x8xf32>, vector<8x8xf32>, vector<8x8xf32> -> vector<8x8xf32>
    %cst_14 = arith.constant -1.000000e+30 : f32
    %18 = vector.broadcast %cst_14 : f32 to vector<8x8xf32>
    %19 = arith.select %13, %17, %18 : vector<8x8xi1>, vector<8x8xf32>
    %cst_15 = arith.constant dense<0xFF800000> : vector<8xf32>
    %20 = vector.multi_reduction <maximumf>, %19, %cst_15 [1] : vector<8x8xf32> to vector<8xf32>
    %21 = vector.shape_cast %20 : vector<8xf32> to vector<8x1xf32>
    %22 = vector.broadcast %21 : vector<8x1xf32> to vector<8x8xf32>
    %23 = arith.subf %19, %22 : vector<8x8xf32>
    %24 = math.exp %23 : vector<8x8xf32>
    %cst_16 = arith.constant dense<0.000000e+00> : vector<8xf32>
    %25 = vector.multi_reduction <add>, %24, %cst_16 [1] : vector<8x8xf32> to vector<8xf32>
    %26 = vector.shape_cast %25 : vector<8xf32> to vector<8x1xf32>
    %27 = tpu.reciprocal %26 {approx = true} : vector<8x1xf32> -> vector<8x1xf32>
    %28 = arith.mulf %26, %27 : vector<8x1xf32>
    %cst_17 = arith.constant 2.000000e+00 : f32
    %29 = vector.broadcast %cst_17 : f32 to vector<8x1xf32>
    %30 = arith.subf %29, %28 : vector<8x1xf32>
    %31 = arith.mulf %27, %30 : vector<8x1xf32>
    %32 = vector.broadcast %31 : vector<8x1xf32> to vector<8x8xf32>
    %33 = arith.mulf %24, %32 : vector<8x8xf32>
    %cst_18 = arith.constant dense<0.000000e+00> : vector<8x8xf32>
    %34 = tpu.matmul %33, %16, %cst_18 {dimension_numbers = #tpu.dot_dimension_numbers<[1], [0], [0], [1], [0, 0, 1, 1], [], []>} : vector<8x8xf32>, vector<8x8xf32>, vector<8x8xf32> -> vector<8x8xf32>
    %35 = vector.extract_strided_slice %2 {offsets = [0, 8], sizes = [8, 8], strides = [1, 1]} : vector<8x32xf32> to vector<8x8xf32>
    %36 = vector.extract_strided_slice %5 {offsets = [0, 8], sizes = [8, 8], strides = [1, 1]} : vector<8x32xf32> to vector<8x8xf32>
    %37 = vector.extract_strided_slice %8 {offsets = [0, 8], sizes = [8, 8], strides = [1, 1]} : vector<8x32xf32> to vector<8x8xf32>
    %cst_19 = arith.constant dense<0.000000e+00> : vector<8x8xf32>
    %38 = tpu.matmul %35, %36, %cst_19 {dimension_numbers = #tpu.dot_dimension_numbers<[1], [1], [0], [0], [0, 0, 1, 0], [], []>} : vector<8x8xf32>, vector<8x8xf32>, vector<8x8xf32> -> vector<8x8xf32>
    %cst_20 = arith.constant -1.000000e+30 : f32
    %39 = vector.broadcast %cst_20 : f32 to vector<8x8xf32>
    %40 = arith.select %13, %38, %39 : vector<8x8xi1>, vector<8x8xf32>
    %cst_21 = arith.constant dense<0xFF800000> : vector<8xf32>
    %41 = vector.multi_reduction <maximumf>, %40, %cst_21 [1] : vector<8x8xf32> to vector<8xf32>
    %42 = vector.shape_cast %41 : vector<8xf32> to vector<8x1xf32>
    %43 = vector.broadcast %42 : vector<8x1xf32> to vector<8x8xf32>
    %44 = arith.subf %40, %43 : vector<8x8xf32>
    %45 = math.exp %44 : vector<8x8xf32>
    %cst_22 = arith.constant dense<0.000000e+00> : vector<8xf32>
    %46 = vector.multi_reduction <add>, %45, %cst_22 [1] : vector<8x8xf32> to vector<8xf32>
    %47 = vector.shape_cast %46 : vector<8xf32> to vector<8x1xf32>
    %48 = tpu.reciprocal %47 {approx = true} : vector<8x1xf32> -> vector<8x1xf32>
    %49 = arith.mulf %47, %48 : vector<8x1xf32>
    %cst_23 = arith.constant 2.000000e+00 : f32
    %50 = vector.broadcast %cst_23 : f32 to vector<8x1xf32>
    %51 = arith.subf %50, %49 : vector<8x1xf32>
    %52 = arith.mulf %48, %51 : vector<8x1xf32>
    %53 = vector.broadcast %52 : vector<8x1xf32> to vector<8x8xf32>
    %54 = arith.mulf %45, %53 : vector<8x8xf32>
    %cst_24 = arith.constant dense<0.000000e+00> : vector<8x8xf32>
    %55 = tpu.matmul %54, %37, %cst_24 {dimension_numbers = #tpu.dot_dimension_numbers<[1], [0], [0], [1], [0, 0, 1, 1], [], []>} : vector<8x8xf32>, vector<8x8xf32>, vector<8x8xf32> -> vector<8x8xf32>
    %56 = vector.extract_strided_slice %2 {offsets = [0, 16], sizes = [8, 8], strides = [1, 1]} : vector<8x32xf32> to vector<8x8xf32>
    %57 = vector.extract_strided_slice %5 {offsets = [0, 16], sizes = [8, 8], strides = [1, 1]} : vector<8x32xf32> to vector<8x8xf32>
    %58 = vector.extract_strided_slice %8 {offsets = [0, 16], sizes = [8, 8], strides = [1, 1]} : vector<8x32xf32> to vector<8x8xf32>
    %cst_25 = arith.constant dense<0.000000e+00> : vector<8x8xf32>
    %59 = tpu.matmul %56, %57, %cst_25 {dimension_numbers = #tpu.dot_dimension_numbers<[1], [1], [0], [0], [0, 0, 1, 0], [], []>} : vector<8x8xf32>, vector<8x8xf32>, vector<8x8xf32> -> vector<8x8xf32>
    %cst_26 = arith.constant -1.000000e+30 : f32
    %60 = vector.broadcast %cst_26 : f32 to vector<8x8xf32>
    %61 = arith.select %13, %59, %60 : vector<8x8xi1>, vector<8x8xf32>
    %cst_27 = arith.constant dense<0xFF800000> : vector<8xf32>
    %62 = vector.multi_reduction <maximumf>, %61, %cst_27 [1] : vector<8x8xf32> to vector<8xf32>
    %63 = vector.shape_cast %62 : vector<8xf32> to vector<8x1xf32>
    %64 = vector.broadcast %63 : vector<8x1xf32> to vector<8x8xf32>
    %65 = arith.subf %61, %64 : vector<8x8xf32>
    %66 = math.exp %65 : vector<8x8xf32>
    %cst_28 = arith.constant dense<0.000000e+00> : vector<8xf32>
    %67 = vector.multi_reduction <add>, %66, %cst_28 [1] : vector<8x8xf32> to vector<8xf32>
    %68 = vector.shape_cast %67 : vector<8xf32> to vector<8x1xf32>
    %69 = tpu.reciprocal %68 {approx = true} : vector<8x1xf32> -> vector<8x1xf32>
    %70 = arith.mulf %68, %69 : vector<8x1xf32>
    %cst_29 = arith.constant 2.000000e+00 : f32
    %71 = vector.broadcast %cst_29 : f32 to vector<8x1xf32>
    %72 = arith.subf %71, %70 : vector<8x1xf32>
    %73 = arith.mulf %69, %72 : vector<8x1xf32>
    %74 = vector.broadcast %73 : vector<8x1xf32> to vector<8x8xf32>
    %75 = arith.mulf %66, %74 : vector<8x8xf32>
    %cst_30 = arith.constant dense<0.000000e+00> : vector<8x8xf32>
    %76 = tpu.matmul %75, %58, %cst_30 {dimension_numbers = #tpu.dot_dimension_numbers<[1], [0], [0], [1], [0, 0, 1, 1], [], []>} : vector<8x8xf32>, vector<8x8xf32>, vector<8x8xf32> -> vector<8x8xf32>
    %77 = vector.extract_strided_slice %2 {offsets = [0, 24], sizes = [8, 8], strides = [1, 1]} : vector<8x32xf32> to vector<8x8xf32>
    %78 = vector.extract_strided_slice %5 {offsets = [0, 24], sizes = [8, 8], strides = [1, 1]} : vector<8x32xf32> to vector<8x8xf32>
    %79 = vector.extract_strided_slice %8 {offsets = [0, 24], sizes = [8, 8], strides = [1, 1]} : vector<8x32xf32> to vector<8x8xf32>
    %cst_31 = arith.constant dense<0.000000e+00> : vector<8x8xf32>
    %80 = tpu.matmul %77, %78, %cst_31 {dimension_numbers = #tpu.dot_dimension_numbers<[1], [1], [0], [0], [0, 0, 1, 0], [], []>} : vector<8x8xf32>, vector<8x8xf32>, vector<8x8xf32> -> vector<8x8xf32>
    %cst_32 = arith.constant -1.000000e+30 : f32
    %81 = vector.broadcast %cst_32 : f32 to vector<8x8xf32>
    %82 = arith.select %13, %80, %81 : vector<8x8xi1>, vector<8x8xf32>
    %cst_33 = arith.constant dense<0xFF800000> : vector<8xf32>
    %83 = vector.multi_reduction <maximumf>, %82, %cst_33 [1] : vector<8x8xf32> to vector<8xf32>
    %84 = vector.shape_cast %83 : vector<8xf32> to vector<8x1xf32>
    %85 = vector.broadcast %84 : vector<8x1xf32> to vector<8x8xf32>
    %86 = arith.subf %82, %85 : vector<8x8xf32>
    %87 = math.exp %86 : vector<8x8xf32>
    %cst_34 = arith.constant dense<0.000000e+00> : vector<8xf32>
    %88 = vector.multi_reduction <add>, %87, %cst_34 [1] : vector<8x8xf32> to vector<8xf32>
    %89 = vector.shape_cast %88 : vector<8xf32> to vector<8x1xf32>
    %90 = tpu.reciprocal %89 {approx = true} : vector<8x1xf32> -> vector<8x1xf32>
    %91 = arith.mulf %89, %90 : vector<8x1xf32>
    %cst_35 = arith.constant 2.000000e+00 : f32
    %92 = vector.broadcast %cst_35 : f32 to vector<8x1xf32>
    %93 = arith.subf %92, %91 : vector<8x1xf32>
    %94 = arith.mulf %90, %93 : vector<8x1xf32>
    %95 = vector.broadcast %94 : vector<8x1xf32> to vector<8x8xf32>
    %96 = arith.mulf %87, %95 : vector<8x8xf32>
    %cst_36 = arith.constant dense<0.000000e+00> : vector<8x8xf32>
    %97 = tpu.matmul %96, %79, %cst_36 {dimension_numbers = #tpu.dot_dimension_numbers<[1], [0], [0], [1], [0, 0, 1, 1], [], []>} : vector<8x8xf32>, vector<8x8xf32>, vector<8x8xf32> -> vector<8x8xf32>
    %98 = tpu.concatenate %34, %55, %76, %97 in 1 : vector<8x8xf32>, vector<8x8xf32>, vector<8x8xf32>, vector<8x8xf32> -> vector<8x32xf32>
    %c0_37 = arith.constant 0 : index
    %c0_38 = arith.constant 0 : index
    %99 = vector.load %arg8[%c0_37, %c0_38] : memref<32x128xf32, #tpu.memory_space<vmem>>, vector<32x128xf32>
    %cst_39 = arith.constant dense<0.000000e+00> : vector<8x128xf32>
    %100 = tpu.matmul %98, %99, %cst_39 {dimension_numbers = #tpu.dot_dimension_numbers<[1], [0], [0], [1], [0, 0, 1, 1], [], []>} : vector<8x32xf32>, vector<32x128xf32>, vector<8x128xf32> -> vector<8x128xf32>
    %c0_40 = arith.constant 0 : index
    %c0_41 = arith.constant 0 : index
    %101 = vector.load %arg9[%c0_40, %c0_41] : memref<8x128xf32, #tpu.memory_space<vmem>>, vector<8x128xf32>
    tpu.vector_store %arg9[%c0_40, %c0_41], %100 {strides = array<i32>} : memref<8x128xf32, #tpu.memory_space<vmem>>, vector<8x128xf32>,
    return
  }
  func.func @transform_0(%arg0: i32, %arg1: memref<2xi32, #tpu.memory_space<smem>>) -> (i32, i32) {
    %c0_i32 = arith.constant 0 : i32
    %c0_i32_0 = arith.constant 0 : i32
    return %arg0, %c0_i32 : i32, i32
  }
  func.func @transform_1(%arg0: i32, %arg1: memref<2xi32, #tpu.memory_space<smem>>) -> (i32, i32) {
    %c0_i32 = arith.constant 0 : i32
    %c0_i32_0 = arith.constant 0 : i32
    return %arg0, %c0_i32 : i32, i32
  }
  func.func @transform_2(%arg0: i32, %arg1: memref<2xi32, #tpu.memory_space<smem>>) -> (i32, i32) {
    %c0_i32 = arith.constant 0 : i32
    %c0_i32_0 = arith.constant 0 : i32
    return %arg0, %c0_i32 : i32, i32
  }
  func.func @transform_3(%arg0: i32, %arg1: memref<2xi32, #tpu.memory_space<smem>>) -> (i32, i32) {
    %c0_i32 = arith.constant 0 : i32
    %c0_i32_0 = arith.constant 0 : i32
    %c0_i32_1 = arith.constant 0 : i32
    return %c0_i32, %c0_i32_0 : i32, i32
  }
  func.func @transform_4(%arg0: i32, %arg1: memref<2xi32, #tpu.memory_space<smem>>) -> (i32, i32) {
    %c0_i32 = arith.constant 0 : i32
    %c0_i32_0 = arith.constant 0 : i32
    %c0_i32_1 = arith.constant 0 : i32
    return %c0_i32, %c0_i32_0 : i32, i32
  }
  func.func @transform_5(%arg0: i32, %arg1: memref<2xi32, #tpu.memory_space<smem>>) -> (i32, i32) {
    %c0_i32 = arith.constant 0 : i32
    %c0_i32_0 = arith.constant 0 : i32
    %c0_i32_1 = arith.constant 0 : i32
    return %c0_i32, %c0_i32_0 : i32, i32
  }
  func.func @transform_6(%arg0: i32, %arg1: memref<2xi32, #tpu.memory_space<smem>>) -> (i32, i32) {
    %c0_i32 = arith.constant 0 : i32
    %c0_i32_0 = arith.constant 0 : i32
    %c0_i32_1 = arith.constant 0 : i32
    return %c0_i32, %c0_i32_0 : i32, i32
  }
  func.func @transform_7(%arg0: i32, %arg1: memref<2xi32, #tpu.memory_space<smem>>) -> (i32, i32) {
    %c0_i32 = arith.constant 0 : i32
    %c0_i32_0 = arith.constant 0 : i32
    return %arg0, %c0_i32 : i32, i32
  }
}

</mosaic_0001>

<llo_original>
// kernel: tpu_custom_call.1
$region0: #{tpu_custom_call.1}
  #allocation0 [shape = 'u32[]', space=smem, size = 0x4, offset = 0x4, fixed_abs, tag = 'smem constant byte address 0x4 - core index']
  #allocation1 [shape = 'u32[144,128]{1,0:T(1,128)}', space=vmem, size = 0x12000, scoped, tag = 'internal scratch']
  #allocation2 [shape = 's32[1]{0}', space=sflag, size = 0x4, scoped, tag = 'scoped memory for tpu_custom_call.1']
  #allocation3 [shape = 'u8[512]{0}', space=smem, size = 0x200, scoped, tag = 'prefetched SMEM operand 0']
  %s0 = inlined_call_operand.hbm [shape: s32[2], index: 0, kind: input, shape index: {}]
  %s1 = inlined_call_operand.hbm [shape: f32[16,32], index: 1, kind: input, shape index: {}]
  %s2 = inlined_call_operand.hbm [shape: f32[16,32], index: 2, kind: input, shape index: {}]
  %s3 = inlined_call_operand.hbm [shape: f32[16,32], index: 3, kind: input, shape index: {}]
  %s4 = inlined_call_operand.hbm [shape: f32[32,32], index: 4, kind: input, shape index: {}]
  %s5 = inlined_call_operand.hbm [shape: f32[32,32], index: 5, kind: input, shape index: {}]
  %s6 = inlined_call_operand.hbm [shape: f32[32,32], index: 6, kind: input, shape index: {}]
  %s7 = inlined_call_operand.hbm [shape: f32[32,128], index: 7, kind: input, shape index: {}]
  %s8 = inlined_call_operand.hbm [shape: f32[16,128], index: 8, kind: output, shape index: {}]
  %s9 = sld [smem:[#allocation0]]
  $region89: #{tpu_custom_call.1} parent=0
    _
  %s11 = ssub.s32 1, %s9
  %s12 = scalar_select 0, %s11, %s9
  %14 = dma.hbm_to_smem %s0, 16, [#allocation3], [#allocation2]
  %15 = dma.done [#allocation2], 16
  %16 = sfence
  $region1: #{tpu_custom_call.1} parent=0
    #allocation4 [shape = 'u8[8192]{0}', space=vmem, size = 0x2000, scoped, tag = 'input window, operand 1']
    #allocation5 [shape = 's32[2]{0}', space=sflag, size = 0x8, scoped, tag = 'scoped memory for tpu_custom_call.1']
    #allocation6 [shape = 's32[2]{0}', space=sflag, size = 0x8, scoped, tag = 'scoped memory for tpu_custom_call.1']
    #allocation7 [shape = 'u8[8192]{0}', space=vmem, size = 0x2000, scoped, tag = 'input window, operand 2']
    #allocation8 [shape = 's32[2]{0}', space=sflag, size = 0x8, scoped, tag = 'scoped memory for tpu_custom_call.1']
    #allocation9 [shape = 'u8[8192]{0}', space=vmem, size = 0x2000, scoped, tag = 'input window, operand 3']
    #allocation10 [shape = 'u8[16384]{0}', space=vmem, size = 0x4000, scoped, tag = 'input window, operand 4, single buffered']
    #allocation11 [shape = 's32[1]{0}', space=sflag, size = 0x4, scoped, tag = 'scoped memory for tpu_custom_call.1']
    #allocation12 [shape = 'u8[16384]{0}', space=vmem, size = 0x4000, scoped, tag = 'input window, operand 5, single buffered']
    #allocation13 [shape = 'u8[16384]{0}', space=vmem, size = 0x4000, scoped, tag = 'input window, operand 6, single buffered']
    #allocation14 [shape = 's32[1]{0}', space=sflag, size = 0x4, scoped, tag = 'scoped memory for tpu_custom_call.1']
    #allocation15 [shape = 'u8[16384]{0}', space=vmem, size = 0x4000, scoped, tag = 'input window, operand 7, single buffered']
    #allocation16 [shape = 'u8[8192]{0}', space=vmem, size = 0x2000, scoped, tag = 'output window, operand 0']
    %17 = vsyncpa [#allocation5], 0
    %s18 = scalar_lea.sflag [#allocation5], 1
    %19 = vsyncpa %s18, 0
    %20 = vsyncpa [#allocation8], 0
    %s21 = scalar_lea.sflag [#allocation8], 1
    %22 = vsyncpa %s21, 0
    %23 = vsyncpa [#allocation11], 0
    %24 = vsyncpa [#allocation14], 0
    %25 = vsyncpa [#allocation6], 0
    %s26 = scalar_lea.sflag [#allocation6], 1
    %27 = vsyncpa %s26, 0
    loop: start=0, step=1, limit=4
    $region2: #{tpu_custom_call.1} parent=1 // loop_pre_header
      _
    $region3: #{tpu_custom_call.1} parent=1 // loop_header
      %s29 = sphi 0, %s33
      %p30 = scmp.ge.s32.totalorder %s29, 4
      %s39 = sphi 0, %s41
      %s42 = sphi 0, %s39
      %s43 = sphi 0, %s42
      %s59 = sphi 0, %s43
      %s65 = sphi 0, %s67
      %s68 = sphi 0, %s65
      %s69 = sphi 0, %s68
      %s85 = sphi 0, %s69
      %s91 = sphi 0, %s93
      %s94 = sphi 0, %s91
      %s95 = sphi 0, %s94
      %s111 = sphi 0, %s95
      %s115 = sphi 0, %s115
      %s117 = sphi 0, %s115
      %s118 = sphi 0, %s117
      %s132 = sphi 0, %s118
      %s136 = sphi 0, %s136
      %s138 = sphi 0, %s136
      %s139 = sphi 0, %s138
      %s153 = sphi 0, %s139
      %s157 = sphi 0, %s157
      %s159 = sphi 0, %s157
      %s160 = sphi 0, %s159
      %s174 = sphi 0, %s160
      %s178 = sphi 0, %s178
      %s180 = sphi 0, %s178
      %s181 = sphi 0, %s180
      %s195 = sphi 0, %s181
      %s201 = sphi 0, %s203
      %s204 = sphi 0, %s201
      %s205 = sphi 0, %s204
      %s221 = sphi 0, %s205
    $region4: #{tpu_custom_call.1} parent=1 // loop_header_branch
      %32 = sbr.rel (%p30) target = $region8
    $region5: #{tpu_custom_call.1} parent=1 // loop_body
      %s34 = ssub.s32 %s29, 1
      %s35 = ssub.s32 %s29, 2
      %s36 = sadd.s32 %s29, 1
      %s37 = ssub.s32 %s29, %s36
      %p38 = scmp.eq.s32.totalorder %s37, 0
      %s40 = sadd.s32 %s39, 1
      %s41 = scalar_select %p38, %s39, %s40
      %p44 = pneg %p38
      %p45 = scmp.eq.s32.totalorder %s29, 1
      %p46 = por %p44, %p45
      %p47 = scmp.ne.s32.totalorder %s39, %s42
      %p48 = scmp.eq.s32.totalorder %s29, 0
      %p49 = por %p47, %p48
      %p50 = scmp.ne.s32.totalorder %s39, %s42
      %p51 = scmp.eq.s32.totalorder %s34, 1
      %p52 = por %p50, %p51
      %p53 = scmp.ne.s32.totalorder %s42, %s43
      %p54 = scmp.eq.s32.totalorder %s34, 0
      %p55 = por %p53, %p54
      %p56 = scmp.ne.s32.totalorder %s42, %s43
      %p57 = scmp.eq.s32.totalorder %s35, 1
      %p58 = por %p56, %p57
      %p60 = scmp.ne.s32.totalorder %s43, %s59
      %p61 = scmp.eq.s32.totalorder %s35, 0
      %p62 = por %p60, %p61
      %s63 = ssub.s32 %s29, %s36
      %p64 = scmp.eq.s32.totalorder %s63, 0
      %s66 = sadd.s32 %s65, 1
      %s67 = scalar_select %p64, %s65, %s66
      %p70 = pneg %p64
      %p71 = scmp.eq.s32.totalorder %s29, 1
      %p72 = por %p70, %p71
      %p73 = scmp.ne.s32.totalorder %s65, %s68
      %p74 = scmp.eq.s32.totalorder %s29, 0
      %p75 = por %p73, %p74
      %p76 = scmp.ne.s32.totalorder %s65, %s68
      %p77 = scmp.eq.s32.totalorder %s34, 1
      %p78 = por %p76, %p77
      %p79 = scmp.ne.s32.totalorder %s68, %s69
      %p80 = scmp.eq.s32.totalorder %s34, 0
      %p81 = por %p79, %p80
      %p82 = scmp.ne.s32.totalorder %s68, %s69
      %p83 = scmp.eq.s32.totalorder %s35, 1
      %p84 = por %p82, %p83
      %p86 = scmp.ne.s32.totalorder %s69, %s85
      %p87 = scmp.eq.s32.totalorder %s35, 0
      %p88 = por %p86, %p87
      %s89 = ssub.s32 %s29, %s36
      %p90 = scmp.eq.s32.totalorder %s89, 0
      %s92 = sadd.s32 %s91, 1
      %s93 = scalar_select %p90, %s91, %s92
      %p96 = pneg %p90
      %p97 = scmp.eq.s32.totalorder %s29, 1
      %p98 = por %p96, %p97
      %p99 = scmp.ne.s32.totalorder %s91, %s94
      %p100 = scmp.eq.s32.totalorder %s29, 0
      %p101 = por %p99, %p100
      %p102 = scmp.ne.s32.totalorder %s91, %s94
      %p103 = scmp.eq.s32.totalorder %s34, 1
      %p104 = por %p102, %p103
      %p105 = scmp.ne.s32.totalorder %s94, %s95
      %p106 = scmp.eq.s32.totalorder %s34, 0
      %p107 = por %p105, %p106
      %p108 = scmp.ne.s32.totalorder %s94, %s95
      %p109 = scmp.eq.s32.totalorder %s35, 1
      %p110 = por %p108, %p109
      %p112 = scmp.ne.s32.totalorder %s95, %s111
      %p113 = scmp.eq.s32.totalorder %s35, 0
      %p114 = por %p112, %p113
      %s116 = sadd.s32 %s115, 1
      %p119 = scmp.eq.s32.totalorder %s29, 1
      %p120 = scmp.ne.s32.totalorder %s115, %s117
      %p121 = scmp.eq.s32.totalorder %s29, 0
      %p122 = por %p120, %p121
      %p123 = scmp.ne.s32.totalorder %s115, %s117
      %p124 = scmp.eq.s32.totalorder %s34, 1
      %p125 = por %p123, %p124
      %p126 = scmp.ne.s32.totalorder %s117, %s118
      %p127 = scmp.eq.s32.totalorder %s34, 0
      %p128 = por %p126, %p127
      %p129 = scmp.ne.s32.totalorder %s117, %s118
      %p130 = scmp.eq.s32.totalorder %s35, 1
      %p131 = por %p129, %p130
      %p133 = scmp.ne.s32.totalorder %s118, %s132
      %p134 = scmp.eq.s32.totalorder %s35, 0
      %p135 = por %p133, %p134
      %s137 = sadd.s32 %s136, 1
      %p140 = scmp.eq.s32.totalorder %s29, 1
      %p141 = scmp.ne.s32.totalorder %s136, %s138
      %p142 = scmp.eq.s32.totalorder %s29, 0
      %p143 = por %p141, %p142
      %p144 = scmp.ne.s32.totalorder %s136, %s138
      %p145 = scmp.eq.s32.totalorder %s34, 1
      %p146 = por %p144, %p145
      %p147 = scmp.ne.s32.totalorder %s138, %s139
      %p148 = scmp.eq.s32.totalorder %s34, 0
      %p149 = por %p147, %p148
      %p150 = scmp.ne.s32.totalorder %s138, %s139
      %p151 = scmp.eq.s32.totalorder %s35, 1
      %p152 = por %p150, %p151
      %p154 = scmp.ne.s32.totalorder %s139, %s153
      %p155 = scmp.eq.s32.totalorder %s35, 0
      %p156 = por %p154, %p155
      %s158 = sadd.s32 %s157, 1
      %p161 = scmp.eq.s32.totalorder %s29, 1
      %p162 = scmp.ne.s32.totalorder %s157, %s159
      %p163 = scmp.eq.s32.totalorder %s29, 0
      %p164 = por %p162, %p163
      %p165 = scmp.ne.s32.totalorder %s157, %s159
      %p166 = scmp.eq.s32.totalorder %s34, 1
      %p167 = por %p165, %p166
      %p168 = scmp.ne.s32.totalorder %s159, %s160
      %p169 = scmp.eq.s32.totalorder %s34, 0
      %p170 = por %p168, %p169
      %p171 = scmp.ne.s32.totalorder %s159, %s160
      %p172 = scmp.eq.s32.totalorder %s35, 1
      %p173 = por %p171, %p172
      %p175 = scmp.ne.s32.totalorder %s160, %s174
      %p176 = scmp.eq.s32.totalorder %s35, 0
      %p177 = por %p175, %p176
      %s179 = sadd.s32 %s178, 1
      %p182 = scmp.eq.s32.totalorder %s29, 1
      %p183 = scmp.ne.s32.totalorder %s178, %s180
      %p184 = scmp.eq.s32.totalorder %s29, 0
      %p185 = por %p183, %p184
      %p186 = scmp.ne.s32.totalorder %s178, %s180
      %p187 = scmp.eq.s32.totalorder %s34, 1
      %p188 = por %p186, %p187
      %p189 = scmp.ne.s32.totalorder %s180, %s181
      %p190 = scmp.eq.s32.totalorder %s34, 0
      %p191 = por %p189, %p190
      %p192 = scmp.ne.s32.totalorder %s180, %s181
      %p193 = scmp.eq.s32.totalorder %s35, 1
      %p194 = por %p192, %p193
      %p196 = scmp.ne.s32.totalorder %s181, %s195
      %p197 = scmp.eq.s32.totalorder %s35, 0
      %p198 = por %p196, %p197
      %s199 = ssub.s32 %s29, %s36
      %p200 = scmp.eq.s32.totalorder %s199, 0
      %s202 = sadd.s32 %s201, 1
      %s203 = scalar_select %p200, %s201, %s202
      %p206 = pneg %p200
      %p207 = scmp.eq.s32.totalorder %s29, 1
      %p208 = por %p206, %p207
      %p209 = scmp.ne.s32.totalorder %s201, %s204
      %p210 = scmp.eq.s32.totalorder %s29, 0
      %p211 = por %p209, %p210
      %p212 = scmp.ne.s32.totalorder %s201, %s204
      %p213 = scmp.eq.s32.totalorder %s34, 1
      %p214 = por %p212, %p213
      %p215 = scmp.ne.s32.totalorder %s204, %s205
      %p216 = scmp.eq.s32.totalorder %s34, 0
      %p217 = por %p215, %p216
      %p218 = scmp.ne.s32.totalorder %s204, %s205
      %p219 = scmp.eq.s32.totalorder %s35, 1
      %p220 = por %p218, %p219
      %p222 = scmp.ne.s32.totalorder %s205, %s221
      %p223 = scmp.eq.s32.totalorder %s35, 0
      %p224 = por %p222, %p223
      %p225 = scmp.le.s32.totalorder 1, %s29
      %p226 = scmp.lt.s32.totalorder %s29, 3
      %p227 = pnand %p225, %p226
      %p228 = pneg %p227
      // Predicated region
      $region9: #{tpu_custom_call.1} parent=5 // pred_check
        _
      $region10: #{tpu_custom_call.1} parent=5 // pred_check_branch
        %230 = sbr.rel (%p227) target = $region12
      $region11: #{tpu_custom_call.1} parent=5 // pred_region
        %s231 = ssub.s32 %s29, 1
        // Predicated region
        $region13: #{tpu_custom_call.1} parent=11 // pred_check
          %p232 = pneg %p128
        $region14: #{tpu_custom_call.1} parent=11 // pred_check_branch
          %234 = sbr.rel (%p232) target = $region16
        $region15: #{tpu_custom_call.1} parent=11 // pred_region
          %s236 = ssub.s32 512, 512
          %237 = vsyncadd [#allocation11], %s236
          %s238 = sshll.u32 [#allocation10], 4
          %s239 = int_to_ptr.vmem [resolvable:$true] %s238
          %244 = dma.hbm_to_vmem [thread:$0]  %s4, 512, %s239, [#allocation11], 128, 128, 8
        $region16: #{tpu_custom_call.1} parent=11 // pred_fallthru
          _
        // Predicated region
        $region17: #{tpu_custom_call.1} parent=11 // pred_check
          %p245 = pneg %p149
        $region18: #{tpu_custom_call.1} parent=11 // pred_check_branch
          %247 = sbr.rel (%p245) target = $region20
        $region19: #{tpu_custom_call.1} parent=11 // pred_region
          %s249 = ssub.s32 512, 512
          %250 = vsyncadd [#allocation11], %s249
          %s251 = sshll.u32 [#allocation12], 4
          %s252 = int_to_ptr.vmem [resolvable:$true] %s251
          %257 = dma.hbm_to_vmem [thread:$0]  %s5, 512, %s252, [#allocation11], 128, 128, 8
        $region20: #{tpu_custom_call.1} parent=11 // pred_fallthru
          _
        // Predicated region
        $region21: #{tpu_custom_call.1} parent=11 // pred_check
          %p258 = pneg %p170
        $region22: #{tpu_custom_call.1} parent=11 // pred_check_branch
          %260 = sbr.rel (%p258) target = $region24
        $region23: #{tpu_custom_call.1} parent=11 // pred_region
          %s262 = ssub.s32 512, 512
          %263 = vsyncadd [#allocation14], %s262
          %s264 = sshll.u32 [#allocation13], 4
          %s265 = int_to_ptr.vmem [resolvable:$true] %s264
          %270 = dma.hbm_to_vmem [thread:$0]  %s6, 512, %s265, [#allocation14], 128, 128, 8
        $region24: #{tpu_custom_call.1} parent=11 // pred_fallthru
          _
        // Predicated region
        $region25: #{tpu_custom_call.1} parent=11 // pred_check
          %p271 = pneg %p191
        $region26: #{tpu_custom_call.1} parent=11 // pred_check_branch
          %273 = sbr.rel (%p271) target = $region28
        $region27: #{tpu_custom_call.1} parent=11 // pred_region
          %s275 = ssub.s32 512, 512
          %276 = vsyncadd [#allocation14], %s275
          %s277 = sshll.u32 [#allocation15], 4
          %s278 = int_to_ptr.vmem [resolvable:$true] %s277
          %283 = dma.hbm_to_vmem [thread:$0]  %s7, 512, %s278, [#allocation14], 128, 128, 8
        $region28: #{tpu_custom_call.1} parent=11 // pred_fallthru
          _
      $region12: #{tpu_custom_call.1} parent=5 // pred_fallthru
        _
      %p284 = scmp.lt.s32.totalorder %s29, 2
      // Predicated region
      $region29: #{tpu_custom_call.1} parent=5 // pred_check
        %p285 = pneg %p284
      $region30: #{tpu_custom_call.1} parent=5 // pred_check_branch
        %287 = sbr.rel (%p285) target = $region32
      $region31: #{tpu_custom_call.1} parent=5 // pred_region
        // Predicated region
        $region33: #{tpu_custom_call.1} parent=31 // pred_check
          %p288 = pneg %p49
        $region34: #{tpu_custom_call.1} parent=31 // pred_check_branch
          %290 = sbr.rel (%p288) target = $region36
        $region35: #{tpu_custom_call.1} parent=31 // pred_region
          %s291 = sand.u32 %s39, 1
          %s292 = scalar_lea.sflag [#allocation5], %s291
          %s293 = sand.u32 %s39, 1
          %s294 = smul.addr %s293, 8
          %s295 = scalar_lea.vmem [#allocation4], %s294
          %s297 = ssub.s32 128, 128
          %298 = vsyncadd %s292, %s297
          %s299 = smul.addr %s29, 128
          %s300 = scalar_lea.hbm %s1, %s299
          %s302 = sshll.u32 %s295, 4
          %s303 = int_to_ptr.vmem [resolvable:$true] %s302
          %305 = dma.hbm_to_vmem [thread:$0]  %s300, 128, %s303, %s292
        $region36: #{tpu_custom_call.1} parent=31 // pred_fallthru
          _
        // Predicated region
        $region37: #{tpu_custom_call.1} parent=31 // pred_check
          %p306 = pneg %p75
        $region38: #{tpu_custom_call.1} parent=31 // pred_check_branch
          %308 = sbr.rel (%p306) target = $region40
        $region39: #{tpu_custom_call.1} parent=31 // pred_region
          %s309 = sand.u32 %s29, 1
          %s310 = scalar_lea.sflag [#allocation8], %s309
          %s311 = sand.u32 %s65, 1
          %s312 = smul.addr %s311, 8
          %s313 = scalar_lea.vmem [#allocation7], %s312
          %s315 = ssub.s32 128, 128
          %316 = vsyncadd %s310, %s315
          %s317 = smul.addr %s29, 128
          %s318 = scalar_lea.hbm %s2, %s317
          %s320 = sshll.u32 %s313, 4
          %s321 = int_to_ptr.vmem [resolvable:$true] %s320
          %323 = dma.hbm_to_vmem [thread:$0]  %s318, 128, %s321, %s310
        $region40: #{tpu_custom_call.1} parent=31 // pred_fallthru
          _
        // Predicated region
        $region41: #{tpu_custom_call.1} parent=31 // pred_check
          %p324 = pneg %p101
        $region42: #{tpu_custom_call.1} parent=31 // pred_check_branch
          %326 = sbr.rel (%p324) target = $region44
        $region43: #{tpu_custom_call.1} parent=31 // pred_region
          %s327 = sand.u32 %s29, 1
          %s328 = scalar_lea.sflag [#allocation8], %s327
          %s329 = sand.u32 %s91, 1
          %s330 = smul.addr %s329, 8
          %s331 = scalar_lea.vmem [#allocation9], %s330
          %s333 = ssub.s32 128, 128
          %334 = vsyncadd %s328, %s333
          %s335 = smul.addr %s29, 128
          %s336 = scalar_lea.hbm %s3, %s335
          %s338 = sshll.u32 %s331, 4
          %s339 = int_to_ptr.vmem [resolvable:$true] %s338
          %341 = dma.hbm_to_vmem [thread:$0]  %s336, 128, %s339, %s328
        $region44: #{tpu_custom_call.1} parent=31 // pred_fallthru
          _
      $region32: #{tpu_custom_call.1} parent=5 // pred_fallthru
        _
      %p342 = scmp.le.s32.totalorder 1, %s29
      %p343 = scmp.lt.s32.totalorder %s29, 3
      %p344 = pnand %p342, %p343
      %p345 = pneg %p344
      // Predicated region
      $region45: #{tpu_custom_call.1} parent=5 // pred_check
        _
      $region46: #{tpu_custom_call.1} parent=5 // pred_check_branch
        %347 = sbr.rel (%p344) target = $region48
      $region47: #{tpu_custom_call.1} parent=5 // pred_region
        %s348 = ssub.s32 %s29, 1
        %s349 = sand.u32 %s42, 1
        %s350 = scalar_lea.sflag [#allocation5], %s349
        %s351 = sand.u32 %s42, 1
        %s352 = smul.addr %s351, 8
        %s353 = scalar_lea.vmem [#allocation4], %s352
        // Predicated region
        $region49: #{tpu_custom_call.1} parent=47 // pred_check
          %p354 = pneg %p55
        $region50: #{tpu_custom_call.1} parent=47 // pred_check_branch
          %356 = sbr.rel (%p354) target = $region52
        $region51: #{tpu_custom_call.1} parent=47 // pred_region
          %357 = dma.done %s350, 128
        $region52: #{tpu_custom_call.1} parent=47 // pred_fallthru
          _
        %s358 = sand.u32 %s34, 1
        %s359 = scalar_lea.sflag [#allocation8], %s358
        %s360 = sand.u32 %s68, 1
        %s361 = smul.addr %s360, 8
        %s362 = scalar_lea.vmem [#allocation7], %s361
        // Predicated region
        $region53: #{tpu_custom_call.1} parent=47 // pred_check
          %p363 = pneg %p81
        $region54: #{tpu_custom_call.1} parent=47 // pred_check_branch
          %365 = sbr.rel (%p363) target = $region56
        $region55: #{tpu_custom_call.1} parent=47 // pred_region
          %366 = dma.done %s359, 128
        $region56: #{tpu_custom_call.1} parent=47 // pred_fallthru
          _
        %s367 = sand.u32 %s34, 1
        %s368 = scalar_lea.sflag [#allocation8], %s367
        %s369 = sand.u32 %s94, 1
        %s370 = smul.addr %s369, 8
        %s371 = scalar_lea.vmem [#allocation9], %s370
        // Predicated region
        $region57: #{tpu_custom_call.1} parent=47 // pred_check
          %p372 = pneg %p107
        $region58: #{tpu_custom_call.1} parent=47 // pred_check_branch
          %374 = sbr.rel (%p372) target = $region60
        $region59: #{tpu_custom_call.1} parent=47 // pred_region
          %375 = dma.done %s368, 128
        $region60: #{tpu_custom_call.1} parent=47 // pred_fallthru
          _
        // Predicated region
        $region61: #{tpu_custom_call.1} parent=47 // pred_check
          %p376 = pneg %p128
        $region62: #{tpu_custom_call.1} parent=47 // pred_check_branch
          %378 = sbr.rel (%p376) target = $region64
        $region63: #{tpu_custom_call.1} parent=47 // pred_region
          %379 = dma.done [#allocation11], 512
        $region64: #{tpu_custom_call.1} parent=47 // pred_fallthru
          _
        // Predicated region
        $region65: #{tpu_custom_call.1} parent=47 // pred_check
          %p380 = pneg %p149
        $region66: #{tpu_custom_call.1} parent=47 // pred_check_branch
          %382 = sbr.rel (%p380) target = $region68
        $region67: #{tpu_custom_call.1} parent=47 // pred_region
          %383 = dma.done [#allocation11], 512
        $region68: #{tpu_custom_call.1} parent=47 // pred_fallthru
          _
        // Predicated region
        $region69: #{tpu_custom_call.1} parent=47 // pred_check
          %p384 = pneg %p170
        $region70: #{tpu_custom_call.1} parent=47 // pred_check_branch
          %386 = sbr.rel (%p384) target = $region72
        $region71: #{tpu_custom_call.1} parent=47 // pred_region
          %387 = dma.done [#allocation14], 512
        $region72: #{tpu_custom_call.1} parent=47 // pred_fallthru
          _
        // Predicated region
        $region73: #{tpu_custom_call.1} parent=47 // pred_check
          %p388 = pneg %p191
        $region74: #{tpu_custom_call.1} parent=47 // pred_check_branch
          %390 = sbr.rel (%p388) target = $region76
        $region75: #{tpu_custom_call.1} parent=47 // pred_region
          %391 = dma.done [#allocation14], 512
        $region76: #{tpu_custom_call.1} parent=47 // pred_fallthru
          _
        %s392 = sand.u32 %s42, 1
        %s393 = scalar_lea.sflag [#allocation5], %s392
        %s394 = sand.u32 %s42, 1
        %s395 = smul.addr %s394, 8
        %s396 = scalar_lea.vmem [#allocation4], %s395
        %p397 = pneg %p55
        %p398 = pneg %p52
        %s399 = sand.u32 %s34, 1
        %s400 = scalar_lea.sflag [#allocation8], %s399
        %s401 = sand.u32 %s68, 1
        %s402 = smul.addr %s401, 8
        %s403 = scalar_lea.vmem [#allocation7], %s402
        %p404 = pneg %p81
        %p405 = pneg %p78
        %s406 = sand.u32 %s34, 1
        %s407 = scalar_lea.sflag [#allocation8], %s406
        %s408 = sand.u32 %s94, 1
        %s409 = smul.addr %s408, 8
        %s410 = scalar_lea.vmem [#allocation9], %s409
        %p411 = pneg %p107
        %p412 = pneg %p104
        %p413 = pneg %p128
        %p414 = pneg %p125
        %p415 = pneg %p149
        %p416 = pneg %p146
        %p417 = pneg %p170
        %p418 = pneg %p167
        %p419 = pneg %p191
        %p420 = pneg %p188
        %p421 = pneg %p217
        %p422 = pneg %p214
        %s423 = sand.u32 %s204, 1
        %s424 = scalar_lea.sflag [#allocation6], %s423
        %s425 = sand.u32 %s204, 1
        %s426 = smul.addr %s425, 8
        %s427 = scalar_lea.vmem [#allocation16], %s426
        %v428 = vld [vmem:[%s353] sm:$0xff]
        %v429 = vld [vmem:[#allocation10] sm:$0xff]
        %v430 = vld [vmem:[#allocation10 + $0x8] sm:$0xff]
        %v431 = vld [vmem:[#allocation10 + $0x10] sm:$0xff]
        %v432 = vld [vmem:[#allocation10 + $0x18] sm:$0xff]
        %vm433 = vcmask 261120
        %v435 = vsel %vm433, %v428, 0
        %437 = vmatprep.subr.mxu0 0.0
        %438 = vmatpush1.msra.mxu0 0.0
        %439 = vmatprep.subr.mxu0 0.0
        %440 = vmatpush1.msra.mxu0 0.0
        %441 = vmatprep.subr.mxu0 0.0
        %442 = vmatpush1.msra.mxu0 0.0
        %443 = vmatprep.subr.mxu0 0.0
        %444 = vmatpush1.msra.mxu0 0.0
        %445 = vmatprep.subr.mxu0 0.0
        %446 = vmatpush1.msra.mxu0 0.0
        %447 = vmatprep.subr.mxu0 0.0
        %448 = vmatpush1.msra.mxu0 0.0
        %449 = vmatprep.subr.mxu0 0.0
        %450 = vmatpush1.msra.mxu0 0.0
        %451 = vmatprep.subr.mxu0 0.0
        %452 = vmatpush1.msra.mxu0 0.0
        %453 = vmatprep.subr.mxu0 0.0
        %454 = vmatpush1.msra.mxu0 0.0
        %455 = vmatprep.subr.mxu0 0.0
        %456 = vmatpush1.msra.mxu0 0.0
        %457 = vmatprep.subr.mxu0 0.0
        %458 = vmatpush1.msra.mxu0 0.0
        %459 = vmatprep.subr.mxu0 0.0
        %460 = vmatpush1.msra.mxu0 0.0
        %461 = vmatprep.subr.mxu0 0.0
        %462 = vmatpush1.msra.mxu0 %v432
        %463 = vmatprep.subr.mxu0 0.0
        %464 = vmatpush1.msra.mxu0 %v431
        %465 = vmatprep.subr.mxu0 0.0
        %466 = vmatpush1.msra.mxu0 %v430
        %467 = vmatprep.subr.mxu0 0.0
        %468 = vmatpush1.msra.mxu0 %v429
        %469 = vmatprep.subr.mxu0 0.0
        %470 = vmatpush2.msra.mxu0 0.0
        %471 = vmatprep.subr.mxu0 0.0
        %472 = vmatpush2.msra.mxu0 0.0
        %473 = vmatprep.subr.mxu0 0.0
        %474 = vmatpush2.msra.mxu0 0.0
        %475 = vmatprep.subr.mxu0 0.0
        %476 = vmatpush2.msra.mxu0 0.0
        %477 = vmatprep.subr.mxu0 0.0
        %478 = vmatpush2.msra.mxu0 0.0
        %479 = vmatprep.subr.mxu0 0.0
        %480 = vmatpush2.msra.mxu0 0.0
        %481 = vmatprep.subr.mxu0 0.0
        %482 = vmatpush2.msra.mxu0 0.0
        %483 = vmatprep.subr.mxu0 0.0
        %484 = vmatpush2.msra.mxu0 0.0
        %485 = vmatprep.subr.mxu0 0.0
        %486 = vmatpush2.msra.mxu0 0.0
        %487 = vmatprep.subr.mxu0 0.0
        %488 = vmatpush2.msra.mxu0 0.0
        %489 = vmatprep.subr.mxu0 0.0
        %490 = vmatpush2.msra.mxu0 0.0
        %491 = vmatprep.subr.mxu0 0.0
        %492 = vmatpush2.msra.mxu0 0.0
        %493 = vmatprep.subr.mxu0 0.0
        %494 = vmatpush2.msra.mxu0 0.0
        %495 = vmatprep.subr.mxu0 0.0
        %496 = vmatpush2.msra.mxu0 0.0
        %497 = vmatprep.subr.mxu0 0.0
        %498 = vmatpush2.msra.mxu0 0.0
        %499 = vmatprep.subr.mxu0 0.0
        %500 = vmatpush2.msra.mxu0 0.0
        %501 = vmatprep.mubr.f32.mxu0 0.0
        %502 = vmatmul.mubr.f32.gmra.mxu0 %v435
        %v503 = vpop.f32.mrf.mxu0
        %v504 = vadd.f32 0.0, %v503
        %v505 = vpop.f32.mrf.mxu0
        %506 = vdwg.mxu0
        %v507 = vld [vmem:[%s362] sm:$0xff]
        %v508 = vld [vmem:[#allocation12] sm:$0xff]
        %v509 = vld [vmem:[#allocation12 + $0x8] sm:$0xff]
        %v510 = vld [vmem:[#allocation12 + $0x10] sm:$0xff]
        %v511 = vld [vmem:[#allocation12 + $0x18] sm:$0xff]
        %v513 = vsel %vm433, %v507, 0
        %515 = vmatprep.subr.mxu0 0.0
        %516 = vmatpush1.msra.mxu0 0.0
        %517 = vmatprep.subr.mxu0 0.0
        %518 = vmatpush1.msra.mxu0 0.0
        %519 = vmatprep.subr.mxu0 0.0
        %520 = vmatpush1.msra.mxu0 0.0
        %521 = vmatprep.subr.mxu0 0.0
        %522 = vmatpush1.msra.mxu0 0.0
        %523 = vmatprep.subr.mxu0 0.0
        %524 = vmatpush1.msra.mxu0 0.0
        %525 = vmatprep.subr.mxu0 0.0
        %526 = vmatpush1.msra.mxu0 0.0
        %527 = vmatprep.subr.mxu0 0.0
        %528 = vmatpush1.msra.mxu0 0.0
        %529 = vmatprep.subr.mxu0 0.0
        %530 = vmatpush1.msra.mxu0 0.0
        %531 = vmatprep.subr.mxu0 0.0
        %532 = vmatpush1.msra.mxu0 0.0
        %533 = vmatprep.subr.mxu0 0.0
        %534 = vmatpush1.msra.mxu0 0.0
        %535 = vmatprep.subr.mxu0 0.0
        %536 = vmatpush1.msra.mxu0 0.0
        %537 = vmatprep.subr.mxu0 0.0
        %538 = vmatpush1.msra.mxu0 0.0
        %539 = vmatprep.subr.mxu0 0.0
        %540 = vmatpush1.msra.mxu0 %v511
        %541 = vmatprep.subr.mxu0 0.0
        %542 = vmatpush1.msra.mxu0 %v510
        %543 = vmatprep.subr.mxu0 0.0
        %544 = vmatpush1.msra.mxu0 %v509
        %545 = vmatprep.subr.mxu0 0.0
        %546 = vmatpush1.msra.mxu0 %v508
        %547 = vmatprep.subr.mxu0 0.0
        %548 = vmatpush2.msra.mxu0 0.0
        %549 = vmatprep.subr.mxu0 0.0
        %550 = vmatpush2.msra.mxu0 0.0
        %551 = vmatprep.subr.mxu0 0.0
        %552 = vmatpush2.msra.mxu0 0.0
        %553 = vmatprep.subr.mxu0 0.0
        %554 = vmatpush2.msra.mxu0 0.0
        %555 = vmatprep.subr.mxu0 0.0
        %556 = vmatpush2.msra.mxu0 0.0
        %557 = vmatprep.subr.mxu0 0.0
        %558 = vmatpush2.msra.mxu0 0.0
        %559 = vmatprep.subr.mxu0 0.0
        %560 = vmatpush2.msra.mxu0 0.0
        %561 = vmatprep.subr.mxu0 0.0
        %562 = vmatpush2.msra.mxu0 0.0
        %563 = vmatprep.subr.mxu0 0.0
        %564 = vmatpush2.msra.mxu0 0.0
        %565 = vmatprep.subr.mxu0 0.0
        %566 = vmatpush2.msra.mxu0 0.0
        %567 = vmatprep.subr.mxu0 0.0
        %568 = vmatpush2.msra.mxu0 0.0
        %569 = vmatprep.subr.mxu0 0.0
        %570 = vmatpush2.msra.mxu0 0.0
        %571 = vmatprep.subr.mxu0 0.0
        %572 = vmatpush2.msra.mxu0 0.0
        %573 = vmatprep.subr.mxu0 0.0
        %574 = vmatpush2.msra.mxu0 0.0
        %575 = vmatprep.subr.mxu0 0.0
        %576 = vmatpush2.msra.mxu0 0.0
        %577 = vmatprep.subr.mxu0 0.0
        %578 = vmatpush2.msra.mxu0 0.0
        %579 = vmatprep.mubr.f32.mxu0 0.0
        %580 = vmatmul.mubr.f32.gmra.mxu0 %v513
        %v581 = vpop.f32.mrf.mxu0
        %v582 = vadd.f32 0.0, %v581
        %v583 = vpop.f32.mrf.mxu0
        %584 = vdwg.mxu0
        %v585 = vld [vmem:[%s371] sm:$0xff]
        %v586 = vld [vmem:[#allocation13] sm:$0xff]
        %v587 = vld [vmem:[#allocation13 + $0x8] sm:$0xff]
        %v588 = vld [vmem:[#allocation13 + $0x10] sm:$0xff]
        %v589 = vld [vmem:[#allocation13 + $0x18] sm:$0xff]
        %v591 = vsel %vm433, %v585, 0
        %593 = vmatprep.subr.mxu0 0.0
        %594 = vmatpush1.msra.mxu0 0.0
        %595 = vmatprep.subr.mxu0 0.0
        %596 = vmatpush1.msra.mxu0 0.0
        %597 = vmatprep.subr.mxu0 0.0
        %598 = vmatpush1.msra.mxu0 0.0
        %599 = vmatprep.subr.mxu0 0.0
        %600 = vmatpush1.msra.mxu0 0.0
        %601 = vmatprep.subr.mxu0 0.0
        %602 = vmatpush1.msra.mxu0 0.0
        %603 = vmatprep.subr.mxu0 0.0
        %604 = vmatpush1.msra.mxu0 0.0
        %605 = vmatprep.subr.mxu0 0.0
        %606 = vmatpush1.msra.mxu0 0.0
        %607 = vmatprep.subr.mxu0 0.0
        %608 = vmatpush1.msra.mxu0 0.0
        %609 = vmatprep.subr.mxu0 0.0
        %610 = vmatpush1.msra.mxu0 0.0
        %611 = vmatprep.subr.mxu0 0.0
        %612 = vmatpush1.msra.mxu0 0.0
        %613 = vmatprep.subr.mxu0 0.0
        %614 = vmatpush1.msra.mxu0 0.0
        %615 = vmatprep.subr.mxu0 0.0
        %616 = vmatpush1.msra.mxu0 0.0
        %617 = vmatprep.subr.mxu0 0.0
        %618 = vmatpush1.msra.mxu0 %v589
        %619 = vmatprep.subr.mxu0 0.0
        %620 = vmatpush1.msra.mxu0 %v588
        %621 = vmatprep.subr.mxu0 0.0
        %622 = vmatpush1.msra.mxu0 %v587
        %623 = vmatprep.subr.mxu0 0.0
        %624 = vmatpush1.msra.mxu0 %v586
        %625 = vmatprep.subr.mxu0 0.0
        %626 = vmatpush2.msra.mxu0 0.0
        %627 = vmatprep.subr.mxu0 0.0
        %628 = vmatpush2.msra.mxu0 0.0
        %629 = vmatprep.subr.mxu0 0.0
        %630 = vmatpush2.msra.mxu0 0.0
        %631 = vmatprep.subr.mxu0 0.0
        %632 = vmatpush2.msra.mxu0 0.0
        %633 = vmatprep.subr.mxu0 0.0
        %634 = vmatpush2.msra.mxu0 0.0
        %635 = vmatprep.subr.mxu0 0.0
        %636 = vmatpush2.msra.mxu0 0.0
        %637 = vmatprep.subr.mxu0 0.0
        %638 = vmatpush2.msra.mxu0 0.0
        %639 = vmatprep.subr.mxu0 0.0
        %640 = vmatpush2.msra.mxu0 0.0
        %641 = vmatprep.subr.mxu0 0.0
        %642 = vmatpush2.msra.mxu0 0.0
        %643 = vmatprep.subr.mxu0 0.0
        %644 = vmatpush2.msra.mxu0 0.0
        %645 = vmatprep.subr.mxu0 0.0
        %646 = vmatpush2.msra.mxu0 0.0
        %647 = vmatprep.subr.mxu0 0.0
        %648 = vmatpush2.msra.mxu0 0.0
        %649 = vmatprep.subr.mxu0 0.0
        %650 = vmatpush2.msra.mxu0 0.0
        %651 = vmatprep.subr.mxu0 0.0
        %652 = vmatpush2.msra.mxu0 0.0
        %653 = vmatprep.subr.mxu0 0.0
        %654 = vmatpush2.msra.mxu0 0.0
        %655 = vmatprep.subr.mxu0 0.0
        %656 = vmatpush2.msra.mxu0 0.0
        %657 = vmatprep.mubr.f32.mxu0 0.0
        %658 = vmatmul.mubr.f32.gmra.mxu0 %v591
        %v659 = vpop.f32.mrf.mxu0
        %v660 = vadd.f32 0.0, %v659
        %v661 = vpop.f32.mrf.mxu0
        %662 = vdwg.mxu0
        %v663 = vlaneseq
        %v664 = vand.u32 %v663, 127
        %s665 = sld [smem:[#allocation3 + %s34]]
        %v666 = vstv %s665
        %vm667 = vcmp.lt.s32.totalorder %v664, %v666
        %vm668 = vcmask 64512
        %v670 = vsel %vm668, %v504, 0
        %v673 = vsel %vm668, %v582, 0
        %675 = vmatprep.subr.mxu0 0.0
        %676 = vmatpush1.xpose.msra.mxu0 0.0
        %677 = vmatprep.subr.mxu0 0.0
        %678 = vmatpush1.xpose.msra.mxu0 0.0
        %679 = vmatprep.subr.mxu0 0.0
        %680 = vmatpush1.xpose.msra.mxu0 0.0
        %681 = vmatprep.subr.mxu0 0.0
        %682 = vmatpush1.xpose.msra.mxu0 0.0
        %683 = vmatprep.subr.mxu0 0.0
        %684 = vmatpush1.xpose.msra.mxu0 0.0
        %685 = vmatprep.subr.mxu0 0.0
        %686 = vmatpush1.xpose.msra.mxu0 0.0
        %687 = vmatprep.subr.mxu0 0.0
        %688 = vmatpush1.xpose.msra.mxu0 0.0
        %689 = vmatprep.subr.mxu0 0.0
        %690 = vmatpush1.xpose.msra.mxu0 0.0
        %691 = vmatprep.subr.mxu0 0.0
        %692 = vmatpush1.xpose.msra.mxu0 0.0
        %693 = vmatprep.subr.mxu0 0.0
        %694 = vmatpush1.xpose.msra.mxu0 0.0
        %695 = vmatprep.subr.mxu0 0.0
        %696 = vmatpush1.xpose.msra.mxu0 0.0
        %697 = vmatprep.subr.mxu0 0.0
        %698 = vmatpush1.xpose.msra.mxu0 0.0
        %699 = vmatprep.subr.mxu0 0.0
        %700 = vmatpush1.xpose.msra.mxu0 0.0
        %701 = vmatprep.subr.mxu0 0.0
        %702 = vmatpush1.xpose.msra.mxu0 0.0
        %703 = vmatprep.subr.mxu0 0.0
        %704 = vmatpush1.xpose.msra.mxu0 0.0
        %705 = vmatprep.subr.mxu0 0.0
        %706 = vmatpush1.xpose.msra.mxu0 %v673
        %707 = vmatprep.subr.mxu0 0.0
        %708 = vmatpush2.xpose.msra.mxu0 0.0
        %709 = vmatprep.subr.mxu0 0.0
        %710 = vmatpush2.xpose.msra.mxu0 0.0
        %711 = vmatprep.subr.mxu0 0.0
        %712 = vmatpush2.xpose.msra.mxu0 0.0
        %713 = vmatprep.subr.mxu0 0.0
        %714 = vmatpush2.xpose.msra.mxu0 0.0
        %715 = vmatprep.subr.mxu0 0.0
        %716 = vmatpush2.xpose.msra.mxu0 0.0
        %717 = vmatprep.subr.mxu0 0.0
        %718 = vmatpush2.xpose.msra.mxu0 0.0
        %719 = vmatprep.subr.mxu0 0.0
        %720 = vmatpush2.xpose.msra.mxu0 0.0
        %721 = vmatprep.subr.mxu0 0.0
        %722 = vmatpush2.xpose.msra.mxu0 0.0
        %723 = vmatprep.subr.mxu0 0.0
        %724 = vmatpush2.xpose.msra.mxu0 0.0
        %725 = vmatprep.subr.mxu0 0.0
        %726 = vmatpush2.xpose.msra.mxu0 0.0
        %727 = vmatprep.subr.mxu0 0.0
        %728 = vmatpush2.xpose.msra.mxu0 0.0
        %729 = vmatprep.subr.mxu0 0.0
        %730 = vmatpush2.xpose.msra.mxu0 0.0
        %731 = vmatprep.subr.mxu0 0.0
        %732 = vmatpush2.xpose.msra.mxu0 0.0
        %733 = vmatprep.subr.mxu0 0.0
        %734 = vmatpush2.xpose.msra.mxu0 0.0
        %735 = vmatprep.subr.mxu0 0.0
        %736 = vmatpush2.xpose.msra.mxu0 0.0
        %737 = vmatprep.subr.mxu0 0.0
        %738 = vmatpush2.xpose.msra.mxu0 0.0
        %739 = vmatprep.mubr.f32.mxu0 0.0
        %740 = vmatmul.mubr.f32.gmra.mxu0 %v670
        %v741 = vpop.f32.mrf.mxu0
        %v742 = vadd.f32 0.0, %v741
        %v743 = vpop.f32.mrf.mxu0
        %744 = vdwg.mxu0
        %v745 = vsel %vm667, %v742, -1e+30
        %v746 = vsel %vm668, %v745, -inf
        %747 = vmax.xlane.f32.xlu0 %v746
        %v748 = vpop.xlane.xlu0 %747
        %v749 = vsub.f32 %v745, %v748
        %v750 = vmul.f32 %v749, 1.442695
        %v751 = vpow.pop %v750
        %v752 = vsel %vm668, %v751, 0.0
        %753 = vadd.xlane.f32.xlu0 %v752
        %v754 = vpop.xlane.xlu0 %753
        %v755 = vrcp.pop %v754
        %v756 = vmul.f32 %v754, %v755
        %v757 = vsub.f32 2.0, %v756
        %v758 = vmul.f32 %v755, %v757
        %v759 = vmul.f32 %v751, %v758
        %v761 = vsel %vm668, %v759, 0
        %763 = vmatprep.subr.mxu0 0.0
        %764 = vmatpush1.msra.mxu0 0.0
        %765 = vmatprep.subr.mxu0 0.0
        %766 = vmatpush1.msra.mxu0 0.0
        %767 = vmatprep.subr.mxu0 0.0
        %768 = vmatpush1.msra.mxu0 0.0
        %769 = vmatprep.subr.mxu0 0.0
        %770 = vmatpush1.msra.mxu0 0.0
        %771 = vmatprep.subr.mxu0 0.0
        %772 = vmatpush1.msra.mxu0 0.0
        %773 = vmatprep.subr.mxu0 0.0
        %774 = vmatpush1.msra.mxu0 0.0
        %775 = vmatprep.subr.mxu0 0.0
        %776 = vmatpush1.msra.mxu0 0.0
        %777 = vmatprep.subr.mxu0 0.0
        %778 = vmatpush1.msra.mxu0 0.0
        %779 = vmatprep.subr.mxu0 0.0
        %780 = vmatpush1.msra.mxu0 0.0
        %781 = vmatprep.subr.mxu0 0.0
        %782 = vmatpush1.msra.mxu0 0.0
        %783 = vmatprep.subr.mxu0 0.0
        %784 = vmatpush1.msra.mxu0 0.0
        %785 = vmatprep.subr.mxu0 0.0
        %786 = vmatpush1.msra.mxu0 0.0
        %787 = vmatprep.subr.mxu0 0.0
        %788 = vmatpush1.msra.mxu0 0.0
        %789 = vmatprep.subr.mxu0 0.0
        %790 = vmatpush1.msra.mxu0 0.0
        %791 = vmatprep.subr.mxu0 0.0
        %792 = vmatpush1.msra.mxu0 0.0
        %793 = vmatprep.subr.mxu0 0.0
        %794 = vmatpush1.msra.mxu0 %v660
        %795 = vmatprep.subr.mxu0 0.0
        %796 = vmatpush2.msra.mxu0 0.0
        %797 = vmatprep.subr.mxu0 0.0
        %798 = vmatpush2.msra.mxu0 0.0
        %799 = vmatprep.subr.mxu0 0.0
        %800 = vmatpush2.msra.mxu0 0.0
        %801 = vmatprep.subr.mxu0 0.0
        %802 = vmatpush2.msra.mxu0 0.0
        %803 = vmatprep.subr.mxu0 0.0
        %804 = vmatpush2.msra.mxu0 0.0
        %805 = vmatprep.subr.mxu0 0.0
        %806 = vmatpush2.msra.mxu0 0.0
        %807 = vmatprep.subr.mxu0 0.0
        %808 = vmatpush2.msra.mxu0 0.0
        %809 = vmatprep.subr.mxu0 0.0
        %810 = vmatpush2.msra.mxu0 0.0
        %811 = vmatprep.subr.mxu0 0.0
        %812 = vmatpush2.msra.mxu0 0.0
        %813 = vmatprep.subr.mxu0 0.0
        %814 = vmatpush2.msra.mxu0 0.0
        %815 = vmatprep.subr.mxu0 0.0
        %816 = vmatpush2.msra.mxu0 0.0
        %817 = vmatprep.subr.mxu0 0.0
        %818 = vmatpush2.msra.mxu0 0.0
        %819 = vmatprep.subr.mxu0 0.0
        %820 = vmatpush2.msra.mxu0 0.0
        %821 = vmatprep.subr.mxu0 0.0
        %822 = vmatpush2.msra.mxu0 0.0
        %823 = vmatprep.subr.mxu0 0.0
        %824 = vmatpush2.msra.mxu0 0.0
        %825 = vmatprep.subr.mxu0 0.0
        %826 = vmatpush2.msra.mxu0 0.0
        %827 = vmatprep.mubr.f32.mxu0 0.0
        %828 = vmatmul.mubr.f32.gmra.mxu0 %v761
        %v829 = vpop.f32.mrf.mxu0
        %v830 = vadd.f32 0.0, %v829
        %v831 = vpop.f32.mrf.mxu0
        %832 = vdwg.mxu0
        %833 = vrot.lane.b32.xlu0 %v504, 120
        %v834 = vpop.permute.xlu0 %833
        %835 = vrot.lane.b32.xlu0 %v582, 120
        %v836 = vpop.permute.xlu0 %835
        %v837 = vsel %vm668, %v834, 0
        %v839 = vsel %vm668, %v836, 0
        %841 = vmatprep.subr.mxu0 0.0
        %842 = vmatpush1.xpose.msra.mxu0 0.0
        %843 = vmatprep.subr.mxu0 0.0
        %844 = vmatpush1.xpose.msra.mxu0 0.0
        %845 = vmatprep.subr.mxu0 0.0
        %846 = vmatpush1.xpose.msra.mxu0 0.0
        %847 = vmatprep.subr.mxu0 0.0
        %848 = vmatpush1.xpose.msra.mxu0 0.0
        %849 = vmatprep.subr.mxu0 0.0
        %850 = vmatpush1.xpose.msra.mxu0 0.0
        %851 = vmatprep.subr.mxu0 0.0
        %852 = vmatpush1.xpose.msra.mxu0 0.0
        %853 = vmatprep.subr.mxu0 0.0
        %854 = vmatpush1.xpose.msra.mxu0 0.0
        %855 = vmatprep.subr.mxu0 0.0
        %856 = vmatpush1.xpose.msra.mxu0 0.0
        %857 = vmatprep.subr.mxu0 0.0
        %858 = vmatpush1.xpose.msra.mxu0 0.0
        %859 = vmatprep.subr.mxu0 0.0
        %860 = vmatpush1.xpose.msra.mxu0 0.0
        %861 = vmatprep.subr.mxu0 0.0
        %862 = vmatpush1.xpose.msra.mxu0 0.0
        %863 = vmatprep.subr.mxu0 0.0
        %864 = vmatpush1.xpose.msra.mxu0 0.0
        %865 = vmatprep.subr.mxu0 0.0
        %866 = vmatpush1.xpose.msra.mxu0 0.0
        %867 = vmatprep.subr.mxu0 0.0
        %868 = vmatpush1.xpose.msra.mxu0 0.0
        %869 = vmatprep.subr.mxu0 0.0
        %870 = vmatpush1.xpose.msra.mxu0 0.0
        %871 = vmatprep.subr.mxu0 0.0
        %872 = vmatpush1.xpose.msra.mxu0 %v839
        %873 = vmatprep.subr.mxu0 0.0
        %874 = vmatpush2.xpose.msra.mxu0 0.0
        %875 = vmatprep.subr.mxu0 0.0
        %876 = vmatpush2.xpose.msra.mxu0 0.0
        %877 = vmatprep.subr.mxu0 0.0
        %878 = vmatpush2.xpose.msra.mxu0 0.0
        %879 = vmatprep.subr.mxu0 0.0
        %880 = vmatpush2.xpose.msra.mxu0 0.0
        %881 = vmatprep.subr.mxu0 0.0
        %882 = vmatpush2.xpose.msra.mxu0 0.0
        %883 = vmatprep.subr.mxu0 0.0
        %884 = vmatpush2.xpose.msra.mxu0 0.0
        %885 = vmatprep.subr.mxu0 0.0
        %886 = vmatpush2.xpose.msra.mxu0 0.0
        %887 = vmatprep.subr.mxu0 0.0
        %888 = vmatpush2.xpose.msra.mxu0 0.0
        %889 = vmatprep.subr.mxu0 0.0
        %890 = vmatpush2.xpose.msra.mxu0 0.0
        %891 = vmatprep.subr.mxu0 0.0
        %892 = vmatpush2.xpose.msra.mxu0 0.0
        %893 = vmatprep.subr.mxu0 0.0
        %894 = vmatpush2.xpose.msra.mxu0 0.0
        %895 = vmatprep.subr.mxu0 0.0
        %896 = vmatpush2.xpose.msra.mxu0 0.0
        %897 = vmatprep.subr.mxu0 0.0
        %898 = vmatpush2.xpose.msra.mxu0 0.0
        %899 = vmatprep.subr.mxu0 0.0
        %900 = vmatpush2.xpose.msra.mxu0 0.0
        %901 = vmatprep.subr.mxu0 0.0
        %902 = vmatpush2.xpose.msra.mxu0 0.0
        %903 = vmatprep.subr.mxu0 0.0
        %904 = vmatpush2.xpose.msra.mxu0 0.0
        %905 = vmatprep.mubr.f32.mxu0 0.0
        %906 = vmatmul.mubr.f32.gmra.mxu0 %v837
        %v907 = vpop.f32.mrf.mxu0
        %v908 = vadd.f32 0.0, %v907
        %v909 = vpop.f32.mrf.mxu0
        %910 = vdwg.mxu0
        %v911 = vsel %vm667, %v908, -1e+30
        %v912 = vsel %vm668, %v911, -inf
        %913 = vmax.xlane.f32.xlu0 %v912
        %v914 = vpop.xlane.xlu0 %913
        %v915 = vsub.f32 %v911, %v914
        %v916 = vmul.f32 %v915, 1.442695
        %v917 = vpow.pop %v916
        %v918 = vsel %vm668, %v917, 0.0
        %919 = vadd.xlane.f32.xlu0 %v918
        %v920 = vpop.xlane.xlu0 %919
        %v921 = vrcp.pop %v920
        %v922 = vmul.f32 %v920, %v921
        %v923 = vsub.f32 2.0, %v922
        %v924 = vmul.f32 %v921, %v923
        %v925 = vmul.f32 %v917, %v924
        %927 = vrot.lane.b32.xlu0 %v660, 120
        %v928 = vpop.permute.xlu0 %927
        %v931 = vsel %vm668, %v925, 0
        %933 = vmatprep.subr.mxu0 0.0
        %934 = vmatpush1.msra.mxu0 0.0
        %935 = vmatprep.subr.mxu0 0.0
        %936 = vmatpush1.msra.mxu0 0.0
        %937 = vmatprep.subr.mxu0 0.0
        %938 = vmatpush1.msra.mxu0 0.0
        %939 = vmatprep.subr.mxu0 0.0
        %940 = vmatpush1.msra.mxu0 0.0
        %941 = vmatprep.subr.mxu0 0.0
        %942 = vmatpush1.msra.mxu0 0.0
        %943 = vmatprep.subr.mxu0 0.0
        %944 = vmatpush1.msra.mxu0 0.0
        %945 = vmatprep.subr.mxu0 0.0
        %946 = vmatpush1.msra.mxu0 0.0
        %947 = vmatprep.subr.mxu0 0.0
        %948 = vmatpush1.msra.mxu0 0.0
        %949 = vmatprep.subr.mxu0 0.0
        %950 = vmatpush1.msra.mxu0 0.0
        %951 = vmatprep.subr.mxu0 0.0
        %952 = vmatpush1.msra.mxu0 0.0
        %953 = vmatprep.subr.mxu0 0.0
        %954 = vmatpush1.msra.mxu0 0.0
        %955 = vmatprep.subr.mxu0 0.0
        %956 = vmatpush1.msra.mxu0 0.0
        %957 = vmatprep.subr.mxu0 0.0
        %958 = vmatpush1.msra.mxu0 0.0
        %959 = vmatprep.subr.mxu0 0.0
        %960 = vmatpush1.msra.mxu0 0.0
        %961 = vmatprep.subr.mxu0 0.0
        %962 = vmatpush1.msra.mxu0 0.0
        %963 = vmatprep.subr.mxu0 0.0
        %964 = vmatpush1.msra.mxu0 %v928
        %965 = vmatprep.subr.mxu0 0.0
        %966 = vmatpush2.msra.mxu0 0.0
        %967 = vmatprep.subr.mxu0 0.0
        %968 = vmatpush2.msra.mxu0 0.0
        %969 = vmatprep.subr.mxu0 0.0
        %970 = vmatpush2.msra.mxu0 0.0
        %971 = vmatprep.subr.mxu0 0.0
        %972 = vmatpush2.msra.mxu0 0.0
        %973 = vmatprep.subr.mxu0 0.0
        %974 = vmatpush2.msra.mxu0 0.0
        %975 = vmatprep.subr.mxu0 0.0
        %976 = vmatpush2.msra.mxu0 0.0
        %977 = vmatprep.subr.mxu0 0.0
        %978 = vmatpush2.msra.mxu0 0.0
        %979 = vmatprep.subr.mxu0 0.0
        %980 = vmatpush2.msra.mxu0 0.0
        %981 = vmatprep.subr.mxu0 0.0
        %982 = vmatpush2.msra.mxu0 0.0
        %983 = vmatprep.subr.mxu0 0.0
        %984 = vmatpush2.msra.mxu0 0.0
        %985 = vmatprep.subr.mxu0 0.0
        %986 = vmatpush2.msra.mxu0 0.0
        %987 = vmatprep.subr.mxu0 0.0
        %988 = vmatpush2.msra.mxu0 0.0
        %989 = vmatprep.subr.mxu0 0.0
        %990 = vmatpush2.msra.mxu0 0.0
        %991 = vmatprep.subr.mxu0 0.0
        %992 = vmatpush2.msra.mxu0 0.0
        %993 = vmatprep.subr.mxu0 0.0
        %994 = vmatpush2.msra.mxu0 0.0
        %995 = vmatprep.subr.mxu0 0.0
        %996 = vmatpush2.msra.mxu0 0.0
        %997 = vmatprep.mubr.f32.mxu0 0.0
        %998 = vmatmul.mubr.f32.gmra.mxu0 %v931
        %v999 = vpop.f32.mrf.mxu0
        %v1000 = vadd.f32 0.0, %v999
        %v1001 = vpop.f32.mrf.mxu0
        %1002 = vdwg.mxu0
        %1003 = vrot.lane.b32.xlu0 %v504, 112
        %v1004 = vpop.permute.xlu0 %1003
        %1005 = vrot.lane.b32.xlu0 %v582, 112
        %v1006 = vpop.permute.xlu0 %1005
        %v1007 = vsel %vm668, %v1004, 0
        %v1009 = vsel %vm668, %v1006, 0
        %1011 = vmatprep.subr.mxu0 0.0
        %1012 = vmatpush1.xpose.msra.mxu0 0.0
        %1013 = vmatprep.subr.mxu0 0.0
        %1014 = vmatpush1.xpose.msra.mxu0 0.0
        %1015 = vmatprep.subr.mxu0 0.0
        %1016 = vmatpush1.xpose.msra.mxu0 0.0
        %1017 = vmatprep.subr.mxu0 0.0
        %1018 = vmatpush1.xpose.msra.mxu0 0.0
        %1019 = vmatprep.subr.mxu0 0.0
        %1020 = vmatpush1.xpose.msra.mxu0 0.0
        %1021 = vmatprep.subr.mxu0 0.0
        %1022 = vmatpush1.xpose.msra.mxu0 0.0
        %1023 = vmatprep.subr.mxu0 0.0
        %1024 = vmatpush1.xpose.msra.mxu0 0.0
        %1025 = vmatprep.subr.mxu0 0.0
        %1026 = vmatpush1.xpose.msra.mxu0 0.0
        %1027 = vmatprep.subr.mxu0 0.0
        %1028 = vmatpush1.xpose.msra.mxu0 0.0
        %1029 = vmatprep.subr.mxu0 0.0
        %1030 = vmatpush1.xpose.msra.mxu0 0.0
        %1031 = vmatprep.subr.mxu0 0.0
        %1032 = vmatpush1.xpose.msra.mxu0 0.0
        %1033 = vmatprep.subr.mxu0 0.0
        %1034 = vmatpush1.xpose.msra.mxu0 0.0
        %1035 = vmatprep.subr.mxu0 0.0
        %1036 = vmatpush1.xpose.msra.mxu0 0.0
        %1037 = vmatprep.subr.mxu0 0.0
        %1038 = vmatpush1.xpose.msra.mxu0 0.0
        %1039 = vmatprep.subr.mxu0 0.0
        %1040 = vmatpush1.xpose.msra.mxu0 0.0
        %1041 = vmatprep.subr.mxu0 0.0
        %1042 = vmatpush1.xpose.msra.mxu0 %v1009
        %1043 = vmatprep.subr.mxu0 0.0
        %1044 = vmatpush2.xpose.msra.mxu0 0.0
        %1045 = vmatprep.subr.mxu0 0.0
        %1046 = vmatpush2.xpose.msra.mxu0 0.0
        %1047 = vmatprep.subr.mxu0 0.0
        %1048 = vmatpush2.xpose.msra.mxu0 0.0
        %1049 = vmatprep.subr.mxu0 0.0
        %1050 = vmatpush2.xpose.msra.mxu0 0.0
        %1051 = vmatprep.subr.mxu0 0.0
        %1052 = vmatpush2.xpose.msra.mxu0 0.0
        %1053 = vmatprep.subr.mxu0 0.0
        %1054 = vmatpush2.xpose.msra.mxu0 0.0
        %1055 = vmatprep.subr.mxu0 0.0
        %1056 = vmatpush2.xpose.msra.mxu0 0.0
        %1057 = vmatprep.subr.mxu0 0.0
        %1058 = vmatpush2.xpose.msra.mxu0 0.0
        %1059 = vmatprep.subr.mxu0 0.0
        %1060 = vmatpush2.xpose.msra.mxu0 0.0
        %1061 = vmatprep.subr.mxu0 0.0
        %1062 = vmatpush2.xpose.msra.mxu0 0.0
        %1063 = vmatprep.subr.mxu0 0.0
        %1064 = vmatpush2.xpose.msra.mxu0 0.0
        %1065 = vmatprep.subr.mxu0 0.0
        %1066 = vmatpush2.xpose.msra.mxu0 0.0
        %1067 = vmatprep.subr.mxu0 0.0
        %1068 = vmatpush2.xpose.msra.mxu0 0.0
        %1069 = vmatprep.subr.mxu0 0.0
        %1070 = vmatpush2.xpose.msra.mxu0 0.0
        %1071 = vmatprep.subr.mxu0 0.0
        %1072 = vmatpush2.xpose.msra.mxu0 0.0
        %1073 = vmatprep.subr.mxu0 0.0
        %1074 = vmatpush2.xpose.msra.mxu0 0.0
        %1075 = vmatprep.mubr.f32.mxu0 0.0
        %1076 = vmatmul.mubr.f32.gmra.mxu0 %v1007
        %v1077 = vpop.f32.mrf.mxu0
        %v1078 = vadd.f32 0.0, %v1077
        %v1079 = vpop.f32.mrf.mxu0
        %1080 = vdwg.mxu0
        %v1081 = vsel %vm667, %v1078, -1e+30
        %v1082 = vsel %vm668, %v1081, -inf
        %1083 = vmax.xlane.f32.xlu0 %v1082
        %v1084 = vpop.xlane.xlu0 %1083
        %v1085 = vsub.f32 %v1081, %v1084
        %v1086 = vmul.f32 %v1085, 1.442695
        %v1087 = vpow.pop %v1086
        %v1088 = vsel %vm668, %v1087, 0.0
        %1089 = vadd.xlane.f32.xlu0 %v1088
        %v1090 = vpop.xlane.xlu0 %1089
        %v1091 = vrcp.pop %v1090
        %v1092 = vmul.f32 %v1090, %v1091
        %v1093 = vsub.f32 2.0, %v1092
        %v1094 = vmul.f32 %v1091, %v1093
        %v1095 = vmul.f32 %v1087, %v1094
        %1096 = vrot.lane.b32.xlu0 %v660, 112
        %v1097 = vpop.permute.xlu0 %1096
        %v1100 = vsel %vm668, %v1095, 0
        %1102 = vmatprep.subr.mxu0 0.0
        %1103 = vmatpush1.msra.mxu0 0.0
        %1104 = vmatprep.subr.mxu0 0.0
        %1105 = vmatpush1.msra.mxu0 0.0
        %1106 = vmatprep.subr.mxu0 0.0
        %1107 = vmatpush1.msra.mxu0 0.0
        %1108 = vmatprep.subr.mxu0 0.0
        %1109 = vmatpush1.msra.mxu0 0.0
        %1110 = vmatprep.subr.mxu0 0.0
        %1111 = vmatpush1.msra.mxu0 0.0
        %1112 = vmatprep.subr.mxu0 0.0
        %1113 = vmatpush1.msra.mxu0 0.0
        %1114 = vmatprep.subr.mxu0 0.0
        %1115 = vmatpush1.msra.mxu0 0.0
        %1116 = vmatprep.subr.mxu0 0.0
        %1117 = vmatpush1.msra.mxu0 0.0
        %1118 = vmatprep.subr.mxu0 0.0
        %1119 = vmatpush1.msra.mxu0 0.0
        %1120 = vmatprep.subr.mxu0 0.0
        %1121 = vmatpush1.msra.mxu0 0.0
        %1122 = vmatprep.subr.mxu0 0.0
        %1123 = vmatpush1.msra.mxu0 0.0
        %1124 = vmatprep.subr.mxu0 0.0
        %1125 = vmatpush1.msra.mxu0 0.0
        %1126 = vmatprep.subr.mxu0 0.0
        %1127 = vmatpush1.msra.mxu0 0.0
        %1128 = vmatprep.subr.mxu0 0.0
        %1129 = vmatpush1.msra.mxu0 0.0
        %1130 = vmatprep.subr.mxu0 0.0
        %1131 = vmatpush1.msra.mxu0 0.0
        %1132 = vmatprep.subr.mxu0 0.0
        %1133 = vmatpush1.msra.mxu0 %v1097
        %1134 = vmatprep.subr.mxu0 0.0
        %1135 = vmatpush2.msra.mxu0 0.0
        %1136 = vmatprep.subr.mxu0 0.0
        %1137 = vmatpush2.msra.mxu0 0.0
        %1138 = vmatprep.subr.mxu0 0.0
        %1139 = vmatpush2.msra.mxu0 0.0
        %1140 = vmatprep.subr.mxu0 0.0
        %1141 = vmatpush2.msra.mxu0 0.0
        %1142 = vmatprep.subr.mxu0 0.0
        %1143 = vmatpush2.msra.mxu0 0.0
        %1144 = vmatprep.subr.mxu0 0.0
        %1145 = vmatpush2.msra.mxu0 0.0
        %1146 = vmatprep.subr.mxu0 0.0
        %1147 = vmatpush2.msra.mxu0 0.0
        %1148 = vmatprep.subr.mxu0 0.0
        %1149 = vmatpush2.msra.mxu0 0.0
        %1150 = vmatprep.subr.mxu0 0.0
        %1151 = vmatpush2.msra.mxu0 0.0
        %1152 = vmatprep.subr.mxu0 0.0
        %1153 = vmatpush2.msra.mxu0 0.0
        %1154 = vmatprep.subr.mxu0 0.0
        %1155 = vmatpush2.msra.mxu0 0.0
        %1156 = vmatprep.subr.mxu0 0.0
        %1157 = vmatpush2.msra.mxu0 0.0
        %1158 = vmatprep.subr.mxu0 0.0
        %1159 = vmatpush2.msra.mxu0 0.0
        %1160 = vmatprep.subr.mxu0 0.0
        %1161 = vmatpush2.msra.mxu0 0.0
        %1162 = vmatprep.subr.mxu0 0.0
        %1163 = vmatpush2.msra.mxu0 0.0
        %1164 = vmatprep.subr.mxu0 0.0
        %1165 = vmatpush2.msra.mxu0 0.0
        %1166 = vmatprep.mubr.f32.mxu0 0.0
        %1167 = vmatmul.mubr.f32.gmra.mxu0 %v1100
        %v1168 = vpop.f32.mrf.mxu0
        %v1169 = vadd.f32 0.0, %v1168
        %v1170 = vpop.f32.mrf.mxu0
        %1171 = vdwg.mxu0
        %1172 = vrot.lane.b32.xlu0 %v504, 104
        %v1173 = vpop.permute.xlu0 %1172
        %1174 = vrot.lane.b32.xlu0 %v582, 104
        %v1175 = vpop.permute.xlu0 %1174
        %v1176 = vsel %vm668, %v1173, 0
        %v1178 = vsel %vm668, %v1175, 0
        %1180 = vmatprep.subr.mxu0 0.0
        %1181 = vmatpush1.xpose.msra.mxu0 0.0
        %1182 = vmatprep.subr.mxu0 0.0
        %1183 = vmatpush1.xpose.msra.mxu0 0.0
        %1184 = vmatprep.subr.mxu0 0.0
        %1185 = vmatpush1.xpose.msra.mxu0 0.0
        %1186 = vmatprep.subr.mxu0 0.0
        %1187 = vmatpush1.xpose.msra.mxu0 0.0
        %1188 = vmatprep.subr.mxu0 0.0
        %1189 = vmatpush1.xpose.msra.mxu0 0.0
        %1190 = vmatprep.subr.mxu0 0.0
        %1191 = vmatpush1.xpose.msra.mxu0 0.0
        %1192 = vmatprep.subr.mxu0 0.0
        %1193 = vmatpush1.xpose.msra.mxu0 0.0
        %1194 = vmatprep.subr.mxu0 0.0
        %1195 = vmatpush1.xpose.msra.mxu0 0.0
        %1196 = vmatprep.subr.mxu0 0.0
        %1197 = vmatpush1.xpose.msra.mxu0 0.0
        %1198 = vmatprep.subr.mxu0 0.0
        %1199 = vmatpush1.xpose.msra.mxu0 0.0
        %1200 = vmatprep.subr.mxu0 0.0
        %1201 = vmatpush1.xpose.msra.mxu0 0.0
        %1202 = vmatprep.subr.mxu0 0.0
        %1203 = vmatpush1.xpose.msra.mxu0 0.0
        %1204 = vmatprep.subr.mxu0 0.0
        %1205 = vmatpush1.xpose.msra.mxu0 0.0
        %1206 = vmatprep.subr.mxu0 0.0
        %1207 = vmatpush1.xpose.msra.mxu0 0.0
        %1208 = vmatprep.subr.mxu0 0.0
        %1209 = vmatpush1.xpose.msra.mxu0 0.0
        %1210 = vmatprep.subr.mxu0 0.0
        %1211 = vmatpush1.xpose.msra.mxu0 %v1178
        %1212 = vmatprep.subr.mxu0 0.0
        %1213 = vmatpush2.xpose.msra.mxu0 0.0
        %1214 = vmatprep.subr.mxu0 0.0
        %1215 = vmatpush2.xpose.msra.mxu0 0.0
        %1216 = vmatprep.subr.mxu0 0.0
        %1217 = vmatpush2.xpose.msra.mxu0 0.0
        %1218 = vmatprep.subr.mxu0 0.0
        %1219 = vmatpush2.xpose.msra.mxu0 0.0
        %1220 = vmatprep.subr.mxu0 0.0
        %1221 = vmatpush2.xpose.msra.mxu0 0.0
        %1222 = vmatprep.subr.mxu0 0.0
        %1223 = vmatpush2.xpose.msra.mxu0 0.0
        %1224 = vmatprep.subr.mxu0 0.0
        %1225 = vmatpush2.xpose.msra.mxu0 0.0
        %1226 = vmatprep.subr.mxu0 0.0
        %1227 = vmatpush2.xpose.msra.mxu0 0.0
        %1228 = vmatprep.subr.mxu0 0.0
        %1229 = vmatpush2.xpose.msra.mxu0 0.0
        %1230 = vmatprep.subr.mxu0 0.0
        %1231 = vmatpush2.xpose.msra.mxu0 0.0
        %1232 = vmatprep.subr.mxu0 0.0
        %1233 = vmatpush2.xpose.msra.mxu0 0.0
        %1234 = vmatprep.subr.mxu0 0.0
        %1235 = vmatpush2.xpose.msra.mxu0 0.0
        %1236 = vmatprep.subr.mxu0 0.0
        %1237 = vmatpush2.xpose.msra.mxu0 0.0
        %1238 = vmatprep.subr.mxu0 0.0
        %1239 = vmatpush2.xpose.msra.mxu0 0.0
        %1240 = vmatprep.subr.mxu0 0.0
        %1241 = vmatpush2.xpose.msra.mxu0 0.0
        %1242 = vmatprep.subr.mxu0 0.0
        %1243 = vmatpush2.xpose.msra.mxu0 0.0
        %1244 = vmatprep.mubr.f32.mxu0 0.0
        %1245 = vmatmul.mubr.f32.gmra.mxu0 %v1176
        %v1246 = vpop.f32.mrf.mxu0
        %v1247 = vadd.f32 0.0, %v1246
        %v1248 = vpop.f32.mrf.mxu0
        %1249 = vdwg.mxu0
        %v1250 = vsel %vm667, %v1247, -1e+30
        %v1251 = vsel %vm668, %v1250, -inf
        %1252 = vmax.xlane.f32.xlu0 %v1251
        %v1253 = vpop.xlane.xlu0 %1252
        %v1254 = vsub.f32 %v1250, %v1253
        %v1255 = vmul.f32 %v1254, 1.442695
        %v1256 = vpow.pop %v1255
        %v1257 = vsel %vm668, %v1256, 0.0
        %1258 = vadd.xlane.f32.xlu0 %v1257
        %v1259 = vpop.xlane.xlu0 %1258
        %v1260 = vrcp.pop %v1259
        %v1261 = vmul.f32 %v1259, %v1260
        %v1262 = vsub.f32 2.0, %v1261
        %v1263 = vmul.f32 %v1260, %v1262
        %v1264 = vmul.f32 %v1256, %v1263
        %1265 = vrot.lane.b32.xlu0 %v660, 104
        %v1266 = vpop.permute.xlu0 %1265
        %v1269 = vsel %vm668, %v1264, 0
        %1271 = vmatprep.subr.mxu0 0.0
        %1272 = vmatpush1.msra.mxu0 0.0
        %1273 = vmatprep.subr.mxu0 0.0
        %1274 = vmatpush1.msra.mxu0 0.0
        %1275 = vmatprep.subr.mxu0 0.0
        %1276 = vmatpush1.msra.mxu0 0.0
        %1277 = vmatprep.subr.mxu0 0.0
        %1278 = vmatpush1.msra.mxu0 0.0
        %1279 = vmatprep.subr.mxu0 0.0
        %1280 = vmatpush1.msra.mxu0 0.0
        %1281 = vmatprep.subr.mxu0 0.0
        %1282 = vmatpush1.msra.mxu0 0.0
        %1283 = vmatprep.subr.mxu0 0.0
        %1284 = vmatpush1.msra.mxu0 0.0
        %1285 = vmatprep.subr.mxu0 0.0
        %1286 = vmatpush1.msra.mxu0 0.0
        %1287 = vmatprep.subr.mxu0 0.0
        %1288 = vmatpush1.msra.mxu0 0.0
        %1289 = vmatprep.subr.mxu0 0.0
        %1290 = vmatpush1.msra.mxu0 0.0
        %1291 = vmatprep.subr.mxu0 0.0
        %1292 = vmatpush1.msra.mxu0 0.0
        %1293 = vmatprep.subr.mxu0 0.0
        %1294 = vmatpush1.msra.mxu0 0.0
        %1295 = vmatprep.subr.mxu0 0.0
        %1296 = vmatpush1.msra.mxu0 0.0
        %1297 = vmatprep.subr.mxu0 0.0
        %1298 = vmatpush1.msra.mxu0 0.0
        %1299 = vmatprep.subr.mxu0 0.0
        %1300 = vmatpush1.msra.mxu0 0.0
        %1301 = vmatprep.subr.mxu0 0.0
        %1302 = vmatpush1.msra.mxu0 %v1266
        %1303 = vmatprep.subr.mxu0 0.0
        %1304 = vmatpush2.msra.mxu0 0.0
        %1305 = vmatprep.subr.mxu0 0.0
        %1306 = vmatpush2.msra.mxu0 0.0
        %1307 = vmatprep.subr.mxu0 0.0
        %1308 = vmatpush2.msra.mxu0 0.0
        %1309 = vmatprep.subr.mxu0 0.0
        %1310 = vmatpush2.msra.mxu0 0.0
        %1311 = vmatprep.subr.mxu0 0.0
        %1312 = vmatpush2.msra.mxu0 0.0
        %1313 = vmatprep.subr.mxu0 0.0
        %1314 = vmatpush2.msra.mxu0 0.0
        %1315 = vmatprep.subr.mxu0 0.0
        %1316 = vmatpush2.msra.mxu0 0.0
        %1317 = vmatprep.subr.mxu0 0.0
        %1318 = vmatpush2.msra.mxu0 0.0
        %1319 = vmatprep.subr.mxu0 0.0
        %1320 = vmatpush2.msra.mxu0 0.0
        %1321 = vmatprep.subr.mxu0 0.0
        %1322 = vmatpush2.msra.mxu0 0.0
        %1323 = vmatprep.subr.mxu0 0.0
        %1324 = vmatpush2.msra.mxu0 0.0
        %1325 = vmatprep.subr.mxu0 0.0
        %1326 = vmatpush2.msra.mxu0 0.0
        %1327 = vmatprep.subr.mxu0 0.0
        %1328 = vmatpush2.msra.mxu0 0.0
        %1329 = vmatprep.subr.mxu0 0.0
        %1330 = vmatpush2.msra.mxu0 0.0
        %1331 = vmatprep.subr.mxu0 0.0
        %1332 = vmatpush2.msra.mxu0 0.0
        %1333 = vmatprep.subr.mxu0 0.0
        %1334 = vmatpush2.msra.mxu0 0.0
        %1335 = vmatprep.mubr.f32.mxu0 0.0
        %1336 = vmatmul.mubr.f32.gmra.mxu0 %v1269
        %v1337 = vpop.f32.mrf.mxu0
        %v1338 = vadd.f32 0.0, %v1337
        %v1339 = vpop.f32.mrf.mxu0
        %1340 = vdwg.mxu0
        %1342 = vrot.lane.b32.xlu0 %v1000, 8
        %v1343 = vpop.permute.xlu0 %1342
        %1346 = vrot.lane.b32.xlu0 %v1169, 16
        %v1347 = vpop.permute.xlu0 %1346
        %1350 = vrot.lane.b32.xlu0 %v1338, 24
        %v1351 = vpop.permute.xlu0 %1350
        %v1353 = vsel %vm668, %v830, %v1343
        %vm1354 = vcmask 130048
        %v1355 = vsel %vm1354, %v1353, %v1347
        %vm1356 = vcmask 195584
        %v1357 = vsel %vm1356, %v1355, %v1351
        %v1358 = vld [vmem:[#allocation15] sm:$0xff]
        %v1359 = vld [vmem:[#allocation15 + $0x8] sm:$0xff]
        %v1360 = vld [vmem:[#allocation15 + $0x10] sm:$0xff]
        %v1361 = vld [vmem:[#allocation15 + $0x18] sm:$0xff]
        %v1363 = vsel %vm433, %v1357, 0
        %1365 = vmatprep.subr.mxu0 0.0
        %1366 = vmatpush1.msra.mxu0 0.0
        %1367 = vmatprep.subr.mxu0 0.0
        %1368 = vmatpush1.msra.mxu0 0.0
        %1369 = vmatprep.subr.mxu0 0.0
        %1370 = vmatpush1.msra.mxu0 0.0
        %1371 = vmatprep.subr.mxu0 0.0
        %1372 = vmatpush1.msra.mxu0 0.0
        %1373 = vmatprep.subr.mxu0 0.0
        %1374 = vmatpush1.msra.mxu0 0.0
        %1375 = vmatprep.subr.mxu0 0.0
        %1376 = vmatpush1.msra.mxu0 0.0
        %1377 = vmatprep.subr.mxu0 0.0
        %1378 = vmatpush1.msra.mxu0 0.0
        %1379 = vmatprep.subr.mxu0 0.0
        %1380 = vmatpush1.msra.mxu0 0.0
        %1381 = vmatprep.subr.mxu0 0.0
        %1382 = vmatpush1.msra.mxu0 0.0
        %1383 = vmatprep.subr.mxu0 0.0
        %1384 = vmatpush1.msra.mxu0 0.0
        %1385 = vmatprep.subr.mxu0 0.0
        %1386 = vmatpush1.msra.mxu0 0.0
        %1387 = vmatprep.subr.mxu0 0.0
        %1388 = vmatpush1.msra.mxu0 0.0
        %1389 = vmatprep.subr.mxu0 0.0
        %1390 = vmatpush1.msra.mxu0 %v1361
        %1391 = vmatprep.subr.mxu0 0.0
        %1392 = vmatpush1.msra.mxu0 %v1360
        %1393 = vmatprep.subr.mxu0 0.0
        %1394 = vmatpush1.msra.mxu0 %v1359
        %1395 = vmatprep.subr.mxu0 0.0
        %1396 = vmatpush1.msra.mxu0 %v1358
        %1397 = vmatprep.subr.mxu0 0.0
        %1398 = vmatpush2.msra.mxu0 0.0
        %1399 = vmatprep.subr.mxu0 0.0
        %1400 = vmatpush2.msra.mxu0 0.0
        %1401 = vmatprep.subr.mxu0 0.0
        %1402 = vmatpush2.msra.mxu0 0.0
        %1403 = vmatprep.subr.mxu0 0.0
        %1404 = vmatpush2.msra.mxu0 0.0
        %1405 = vmatprep.subr.mxu0 0.0
        %1406 = vmatpush2.msra.mxu0 0.0
        %1407 = vmatprep.subr.mxu0 0.0
        %1408 = vmatpush2.msra.mxu0 0.0
        %1409 = vmatprep.subr.mxu0 0.0
        %1410 = vmatpush2.msra.mxu0 0.0
        %1411 = vmatprep.subr.mxu0 0.0
        %1412 = vmatpush2.msra.mxu0 0.0
        %1413 = vmatprep.subr.mxu0 0.0
        %1414 = vmatpush2.msra.mxu0 0.0
        %1415 = vmatprep.subr.mxu0 0.0
        %1416 = vmatpush2.msra.mxu0 0.0
        %1417 = vmatprep.subr.mxu0 0.0
        %1418 = vmatpush2.msra.mxu0 0.0
        %1419 = vmatprep.subr.mxu0 0.0
        %1420 = vmatpush2.msra.mxu0 0.0
        %1421 = vmatprep.subr.mxu0 0.0
        %1422 = vmatpush2.msra.mxu0 0.0
        %1423 = vmatprep.subr.mxu0 0.0
        %1424 = vmatpush2.msra.mxu0 0.0
        %1425 = vmatprep.subr.mxu0 0.0
        %1426 = vmatpush2.msra.mxu0 0.0
        %1427 = vmatprep.subr.mxu0 0.0
        %1428 = vmatpush2.msra.mxu0 0.0
        %1429 = vmatprep.mubr.f32.mxu0 0.0
        %1430 = vmatmul.mubr.f32.gmra.mxu0 %v1363
        %v1431 = vpop.f32.mrf.mxu0
        %v1432 = vadd.f32 0.0, %v1431
        %v1433 = vpop.f32.mrf.mxu0
        %1434 = vdwg.mxu0
        %1435 = vst [vmem:[%s427] sm:$0xff] %v1432
        %s1436 = sand.u32 %s204, 1
        %s1437 = scalar_lea.sflag [#allocation6], %s1436
        %s1438 = sand.u32 %s204, 1
        %s1439 = smul.addr %s1438, 8
        %s1440 = scalar_lea.vmem [#allocation16], %s1439
        // Predicated region
        $region77: #{tpu_custom_call.1} parent=47 // pred_check
          %p1441 = pneg %p214
        $region78: #{tpu_custom_call.1} parent=47 // pred_check_branch
          %1443 = sbr.rel (%p1441) target = $region80
        $region79: #{tpu_custom_call.1} parent=47 // pred_region
          %s1445 = ssub.s32 128, 128
          %1446 = vsyncadd %s1437, %s1445
          %s1447 = smul.addr %s34, 128
          %s1448 = scalar_lea.hbm %s8, %s1447
          %s1450 = sshll.u32 %s1440, 4
          %s1451 = int_to_ptr.vmem [resolvable:$true] %s1450
          %1453 = dma.vmem_to_hbm [thread:$0]  %s1451, 128, %s1448, %s1437
        $region80: #{tpu_custom_call.1} parent=47 // pred_fallthru
          _
      $region48: #{tpu_custom_call.1} parent=5 // pred_fallthru
        _
      %p1454 = scmp.le.s32.totalorder 2, %s29
      // Predicated region
      $region81: #{tpu_custom_call.1} parent=5 // pred_check
        %p1455 = pneg %p1454
      $region82: #{tpu_custom_call.1} parent=5 // pred_check_branch
        %1457 = sbr.rel (%p1455) target = $region84
      $region83: #{tpu_custom_call.1} parent=5 // pred_region
        %s1458 = ssub.s32 %s29, 2
        // Predicated region
        $region85: #{tpu_custom_call.1} parent=83 // pred_check
          %p1459 = pneg %p220
        $region86: #{tpu_custom_call.1} parent=83 // pred_check_branch
          %1461 = sbr.rel (%p1459) target = $region88
        $region87: #{tpu_custom_call.1} parent=83 // pred_region
          %s1462 = sand.u32 %s205, 1
          %s1463 = scalar_lea.sflag [#allocation6], %s1462
          %s1464 = sand.u32 %s205, 1
          %s1465 = smul.addr %s1464, 8
          %s1466 = scalar_lea.vmem [#allocation16], %s1465
          %1467 = dma.done %s1463, 128
        $region88: #{tpu_custom_call.1} parent=83 // pred_fallthru
          _
      $region84: #{tpu_custom_call.1} parent=5 // pred_fallthru
        _
    $region6: #{tpu_custom_call.1} parent=1 // loop_footer
      %s33 = sadd.s32 1, %s29
    $region7: #{tpu_custom_call.1} parent=1 // loop_footer_branch
      %28 = sbr.rel target = $region3
    $region8: #{tpu_custom_call.1} parent=1 // loop_exit
      _
    %1468 = vsyncpa [#allocation5], 1
    %s1469 = scalar_lea.sflag [#allocation5], 1
    %1470 = vsyncpa %s1469, 1
    %1471 = vsyncpa [#allocation8], 1
    %s1472 = scalar_lea.sflag [#allocation8], 1
    %1473 = vsyncpa %s1472, 1
    %1474 = vsyncpa [#allocation11], 1
    %1475 = vsyncpa [#allocation14], 1
    %1476 = vsyncpa [#allocation6], 1
    %s1477 = scalar_lea.sflag [#allocation6], 1
    %1478 = vsyncpa %s1477, 1

</llo_original>
